<compile_context>
chip_gen: v5e
topology: v5e:2x2
jax: 0.10.0
libtpu: 0.0.40
codegen_flags: <defaults>
</compile_context>

<pallas_src>
import functools
import math

import jax
import jax.numpy as jnp
from jax.experimental import pallas as pl
from jax.experimental.pallas import tpu as pltpu

# ----------------------------- configuration -----------------------------
D_MODEL = 32      # embedding dim
N_HEADS = 4       # attention heads
D_FF = 64         # feedforward hidden dim
N_LAYERS = 2      # num_layers of TransformerEncoder
SEQ = 8           # sequence length S
BATCH = 2         # batch size B
LN_EPS = 1e-5


# ------------------------------ Pallas kernel ------------------------------
def _layer_norm(v, g, b):
    mu = jnp.mean(v, axis=-1, keepdims=True)
    var = jnp.mean((v - mu) * (v - mu), axis=-1, keepdims=True)
    return (v - mu) * jax.lax.rsqrt(var + LN_EPS) * g + b


def encoder_stack_kernel(
    x_ref,        # (1, S, D)      one batch element
    wq_ref,       # (L, H, D, hd)  per-head Q weight, already (in_dim, head_dim)
    wk_ref,       # (L, H, D, hd)
    wv_ref,       # (L, H, D, hd)
    bq_ref,       # (L, H, 1, hd)
    bk_ref,       # (L, H, 1, hd)
    bv_ref,       # (L, H, 1, hd)
    wo_ref,       # (L, H, hd, D)  per-head slice of out-proj (W_out.T)
    bo_ref,       # (L, 1, D)
    ln1g_ref,     # (L, 1, D)
    ln1b_ref,     # (L, 1, D)
    w1_ref,       # (L, D, FF)     FFN linear1, pre-transposed
    b1_ref,       # (L, 1, FF)
    w2_ref,       # (L, FF, D)     FFN linear2, pre-transposed
    b2_ref,       # (L, 1, D)
    ln2g_ref,     # (L, 1, D)
    ln2b_ref,     # (L, 1, D)
    out_ref,      # (1, S, D)
    *,
    num_layers: int,
    num_heads: int,
):
    x = x_ref[0]                              # (S, D)
    S, D = x.shape
    hd = D // num_heads
    scale = 1.0 / math.sqrt(hd)

    for l in range(num_layers):               # static loop: all layers fused
        # ---- multi-head self-attention, heads batched on the leading axis ----
        xb = jnp.broadcast_to(x, (num_heads, S, D))                     # (H, S, D)
        q = jnp.einsum('hsd,hde->hse', xb, wq_ref[l],
                       preferred_element_type=jnp.float32) + bq_ref[l]  # (H, S, hd)
        k = jnp.einsum('hsd,hde->hse', xb, wk_ref[l],
                       preferred_element_type=jnp.float32) + bk_ref[l]
        v = jnp.einsum('hsd,hde->hse', xb, wv_ref[l],
                       preferred_element_type=jnp.float32) + bv_ref[l]

        s = jnp.einsum('hqe,hke->hqk', q, k,
                       preferred_element_type=jnp.float32) * scale      # (H, S, S)
        s = s - jnp.max(s, axis=-1, keepdims=True)
        p = jnp.exp(s)
        denom = jnp.sum(p, axis=-1, keepdims=True)
        r = pl.reciprocal(denom, approx=True)      # EUP vrcp
        r = r * (2.0 - denom * r)                  # one Newton step -> ~exact
        p = p * r

        ctx = jnp.einsum('hqk,hke->hqe', p, v,
                         preferred_element_type=jnp.float32)            # (H, S, hd)
        o = jnp.einsum('hse,hed->hsd', ctx, wo_ref[l],
                       preferred_element_type=jnp.float32)              # (H, S, D)
        attn = jnp.sum(o, axis=0) + bo_ref[l]                           # (S, D)

        # ---- residual + LayerNorm 1 ----
        y = _layer_norm(x + attn, ln1g_ref[l], ln1b_ref[l])

        # ---- feed-forward (Linear -> ReLU -> Linear), pre-transposed weights ----
        h1 = jnp.dot(y, w1_ref[l], preferred_element_type=jnp.float32) + b1_ref[l]
        h1 = jnp.maximum(h1, 0.0)
        ffn = jnp.dot(h1, w2_ref[l], preferred_element_type=jnp.float32) + b2_ref[l]

        # ---- residual + LayerNorm 2 ----
        x = _layer_norm(y + ffn, ln2g_ref[l], ln2b_ref[l])

    out_ref[0] = x


# --------------------------- host-side param packing ------------------------
def pack_params(layer_params, num_heads):
    """Stack PyTorch-layout per-layer params into kernel-friendly tensors."""
    D = layer_params[0]["wqkv"].shape[1]
    hd = D // num_heads

    def per_layer(p):
        wqkv = p["wqkv"]                       # (3D, D); y = x @ W.T + b
        bqkv = p["bqkv"]                       # (3D,)

        def head_w(w):                         # (D, D) -> (H, D, hd)
            return jnp.transpose(w.reshape(num_heads, hd, D), (0, 2, 1))

        def head_b(b):                         # (D,) -> (H, 1, hd)
            return b.reshape(num_heads, 1, hd)

        return dict(
            wq=head_w(wqkv[0 * D:1 * D]), wk=head_w(wqkv[1 * D:2 * D]),
            wv=head_w(wqkv[2 * D:3 * D]),
            bq=head_b(bqkv[0 * D:1 * D]), bk=head_b(bqkv[1 * D:2 * D]),
            bv=head_b(bqkv[2 * D:3 * D]),
            wo=jnp.transpose(p["wo"]).reshape(num_heads, hd, D),  # (H, hd, D)
            bo=p["bo"].reshape(1, D),
            ln1g=p["ln1g"].reshape(1, D), ln1b=p["ln1b"].reshape(1, D),
            w1=jnp.transpose(p["w1"]),          # (D, FF)
            b1=p["b1"].reshape(1, -1),
            w2=jnp.transpose(p["w2"]),          # (FF, D)
            b2=p["b2"].reshape(1, D),
            ln2g=p["ln2g"].reshape(1, D), ln2b=p["ln2b"].reshape(1, D),
        )

    per = [per_layer(p) for p in layer_params]
    return {k: jnp.stack([q[k] for q in per], axis=0) for k in per[0]}


# ------------------------------ pallas wrapper ------------------------------
_PARAM_ORDER = ["wq", "wk", "wv", "bq", "bk", "bv", "wo", "bo",
                "ln1g", "ln1b", "w1", "b1", "w2", "b2", "ln2g", "ln2b"]


def transformer_encoder_pallas(src_sbd, packed, *, num_heads=N_HEADS):
    """Mirrors TransformerEncoder.forward(src, None, None, need_weights=False).

    src_sbd: (S, B, D) seq-first, like nn.MultiheadAttention's default layout.
    """
    S, B, D = src_sbd.shape
    L = packed["wq"].shape[0]

    x = jnp.transpose(src_sbd, (1, 0, 2))          # (B, S, D) for the kernel

    def full_spec(shape):
        n = len(shape)
        return pl.BlockSpec(shape, lambda b: (0,) * n)   # whole array, VMEM-resident

    in_specs = [pl.BlockSpec((1, S, D), lambda b: (b, 0, 0))]
    in_specs += [full_spec(tuple(packed[name].shape)) for name in _PARAM_ORDER]

    kernel = functools.partial(encoder_stack_kernel,
                               num_layers=L, num_heads=num_heads)

    out = pl.pallas_call(
        kernel,
        out_shape=jax.ShapeDtypeStruct((B, S, D), x.dtype),
        grid=(B,),
        in_specs=in_specs,
        out_specs=pl.BlockSpec((1, S, D), lambda b: (b, 0, 0)),
        compiler_params=pltpu.CompilerParams(dimension_semantics=("parallel",)),
    )(x, *[packed[name] for name in _PARAM_ORDER])

    return jnp.transpose(out, (1, 0, 2))           # back to (S, B, D)


# --------------------------- pure-JAX reference ----------------------------
def encoder_layer_ref(x_bsd, p):
    D = x_bsd.shape[-1]
    hd = D // N_HEADS
    qkv = jnp.einsum("bsd,ed->bse", x_bsd, p["wqkv"]) + p["bqkv"]
    q, k, v = qkv[..., :D], qkv[..., D:2 * D], qkv[..., 2 * D:]
    r = lambda t: t.reshape(t.shape[0], t.shape[1], N_HEADS, hd)
    q, k, v = r(q), r(k), r(v)
    s = jnp.einsum("bqhe,bkhe->bhqk", q, k) / math.sqrt(hd)
    a = jax.nn.softmax(s, axis=-1)
    ctx = jnp.einsum("bhqk,bkhe->bqhe", a, v).reshape(x_bsd.shape)
    attn = jnp.einsum("bsd,ed->bse", ctx, p["wo"]) + p["bo"]
    y = x_bsd + attn
    y = (y - y.mean(-1, keepdims=True)) * jax.lax.rsqrt(y.var(-1, keepdims=True) + LN_EPS)
    y = y * p["ln1g"] + p["ln1b"]
    h = jnp.maximum(jnp.einsum("bsd,fd->bsf", y, p["w1"]) + p["b1"], 0.0)
    f = jnp.einsum("bsf,df->bsd", h, p["w2"]) + p["b2"]
    z = y + f
    z = (z - z.mean(-1, keepdims=True)) * jax.lax.rsqrt(z.var(-1, keepdims=True) + LN_EPS)
    return z * p["ln2g"] + p["ln2b"]


def transformer_encoder_ref(src_sbd, layer_params):
    x = jnp.transpose(src_sbd, (1, 0, 2))
    for p in layer_params:
        x = encoder_layer_ref(x, p)
    return jnp.transpose(x, (1, 0, 2))


# ------------------------------ param init ---------------------------------
def init_layer_params(key, d_model, d_ff):
    ks = jax.random.split(key, 6)
    scale = 0.05
    return {
        "wqkv": scale * jax.random.normal(ks[0], (3 * d_model, d_model), jnp.float32),
        "bqkv": 0.01 * jax.random.normal(ks[1], (3 * d_model,), jnp.float32),
        "wo":   scale * jax.random.normal(ks[2], (d_model, d_model), jnp.float32),
        "bo":   jnp.zeros((d_model,), jnp.float32),
        "ln1g": jnp.ones((d_model,), jnp.float32),
        "ln1b": jnp.zeros((d_model,), jnp.float32),
        "w1":   scale * jax.random.normal(ks[3], (d_ff, d_model), jnp.float32),
        "b1":   0.01 * jax.random.normal(ks[4], (d_ff,), jnp.float32),
        "w2":   scale * jax.random.normal(ks[5], (d_model, d_ff), jnp.float32),
        "b2":   jnp.zeros((d_model,), jnp.float32),
        "ln2g": jnp.ones((d_model,), jnp.float32),
        "ln2b": jnp.zeros((d_model,), jnp.float32),
    }


# ---------------------------------- main ------------------------------------
if __name__ == "__main__":
    root = jax.random.PRNGKey(0)
    k_in, *k_layers = jax.random.split(root, 1 + N_LAYERS)

    # TransformerEncoder deep-copies one layer; here each layer gets its own
    # deterministic params (identical semantics to N independent layers).
    layer_params = [init_layer_params(k, D_MODEL, D_FF) for k in k_layers]
    packed = pack_params(layer_params, N_HEADS)

    src = jax.random.normal(k_in, (SEQ, BATCH, D_MODEL), jnp.float32)   # (S, B, D)

    out = transformer_encoder_pallas(src, packed)
    out = jax.block_until_ready(out)

    ref = transformer_encoder_ref(src, layer_params)
    assert out.shape == (SEQ, BATCH, D_MODEL)
    err = jnp.max(jnp.abs(out - ref))
    assert jnp.allclose(out, ref, atol=1e-3, rtol=1e-3), f"mismatch vs reference, max abs err {err}"

    print("KERNEL_OK")
</pallas_src>

<mosaic_0001>
module attributes {stable_mosaic.version = 11 : i64} {
  func.func @encoder_stack_kernel(%arg0: i32, %arg1: memref<1x8x32xf32, #tpu.memory_space<vmem>>, %arg2: memref<2x4x32x8xf32, #tpu.memory_space<vmem>>, %arg3: memref<2x4x32x8xf32, #tpu.memory_space<vmem>>, %arg4: memref<2x4x32x8xf32, #tpu.memory_space<vmem>>, %arg5: memref<2x4x1x8xf32, #tpu.memory_space<vmem>>, %arg6: memref<2x4x1x8xf32, #tpu.memory_space<vmem>>, %arg7: memref<2x4x1x8xf32, #tpu.memory_space<vmem>>, %arg8: memref<2x4x8x32xf32, #tpu.memory_space<vmem>>, %arg9: memref<2x1x32xf32, #tpu.memory_space<vmem>>, %arg10: memref<2x1x32xf32, #tpu.memory_space<vmem>>, %arg11: memref<2x1x32xf32, #tpu.memory_space<vmem>>, %arg12: memref<2x32x64xf32, #tpu.memory_space<vmem>>, %arg13: memref<2x1x64xf32, #tpu.memory_space<vmem>>, %arg14: memref<2x64x32xf32, #tpu.memory_space<vmem>>, %arg15: memref<2x1x32xf32, #tpu.memory_space<vmem>>, %arg16: memref<2x1x32xf32, #tpu.memory_space<vmem>>, %arg17: memref<2x1x32xf32, #tpu.memory_space<vmem>>, %arg18: memref<1x8x32xf32, #tpu.memory_space<vmem>>) attributes {dimension_semantics = [#tpu.dimension_semantics<parallel>], iteration_bounds = array<i64: 2>, scalar_prefetch = 0 : i64, scratch_operands = 0 : i64, tpu.core_type = #tpu.core_type<tc>, window_params = [{transform_indices = @transform_0, window_bounds = array<i64: 1, 8, 32>}, {pipeline_mode = #tpu.pipeline_mode<synchronous>, transform_indices = @transform_1, window_bounds = array<i64: 2, 4, 32, 8>}, {pipeline_mode = #tpu.pipeline_mode<synchronous>, transform_indices = @transform_2, window_bounds = array<i64: 2, 4, 32, 8>}, {pipeline_mode = #tpu.pipeline_mode<synchronous>, transform_indices = @transform_3, window_bounds = array<i64: 2, 4, 32, 8>}, {pipeline_mode = #tpu.pipeline_mode<synchronous>, transform_indices = @transform_4, window_bounds = array<i64: 2, 4, 1, 8>}, {pipeline_mode = #tpu.pipeline_mode<synchronous>, transform_indices = @transform_5, window_bounds = array<i64: 2, 4, 1, 8>}, {pipeline_mode = #tpu.pipeline_mode<synchronous>, transform_indices = @transform_6, window_bounds = array<i64: 2, 4, 1, 8>}, {pipeline_mode = #tpu.pipeline_mode<synchronous>, transform_indices = @transform_7, window_bounds = array<i64: 2, 4, 8, 32>}, {pipeline_mode = #tpu.pipeline_mode<synchronous>, transform_indices = @transform_8, window_bounds = array<i64: 2, 1, 32>}, {pipeline_mode = #tpu.pipeline_mode<synchronous>, transform_indices = @transform_9, window_bounds = array<i64: 2, 1, 32>}, {pipeline_mode = #tpu.pipeline_mode<synchronous>, transform_indices = @transform_10, window_bounds = array<i64: 2, 1, 32>}, {pipeline_mode = #tpu.pipeline_mode<synchronous>, transform_indices = @transform_11, window_bounds = array<i64: 2, 32, 64>}, {pipeline_mode = #tpu.pipeline_mode<synchronous>, transform_indices = @transform_12, window_bounds = array<i64: 2, 1, 64>}, {pipeline_mode = #tpu.pipeline_mode<synchronous>, transform_indices = @transform_13, window_bounds = array<i64: 2, 64, 32>}, {pipeline_mode = #tpu.pipeline_mode<synchronous>, transform_indices = @transform_14, window_bounds = array<i64: 2, 1, 32>}, {pipeline_mode = #tpu.pipeline_mode<synchronous>, transform_indices = @transform_15, window_bounds = array<i64: 2, 1, 32>}, {pipeline_mode = #tpu.pipeline_mode<synchronous>, transform_indices = @transform_16, window_bounds = array<i64: 2, 1, 32>}, {transform_indices = @transform_17, window_bounds = array<i64: 1, 8, 32>}]} {
    %c0 = arith.constant 0 : index
    %c0_0 = arith.constant 0 : index
    %c0_1 = arith.constant 0 : index
    %0 = vector.load %arg1[%c0, %c0_0, %c0_1] : memref<1x8x32xf32, #tpu.memory_space<vmem>>, vector<1x8x32xf32>
    %1 = vector.shape_cast %0 : vector<1x8x32xf32> to vector<8x32xf32>
    %2 = vector.shape_cast %1 : vector<8x32xf32> to vector<1x8x32xf32>
    %3 = vector.broadcast %2 : vector<1x8x32xf32> to vector<4x8x32xf32>
    %c0_2 = arith.constant 0 : index
    %c0_3 = arith.constant 0 : index
    %c0_4 = arith.constant 0 : index
    %c0_5 = arith.constant 0 : index
    %4 = vector.load %arg2[%c0_2, %c0_3, %c0_4, %c0_5] : memref<2x4x32x8xf32, #tpu.memory_space<vmem>>, vector<1x4x32x8xf32>
    %5 = vector.shape_cast %4 : vector<1x4x32x8xf32> to vector<4x32x8xf32>
    "tpu.trace_start"() <{level = 10 : i32, message = "hsd,hde->hse"}> : () -> ()
    %cst = arith.constant dense<0.000000e+00> : vector<4x8x8xf32>
    %6 = tpu.matmul %3, %5, %cst {dimension_numbers = #tpu.dot_dimension_numbers<[2], [1], [1], [2], [0, 0, 0, 1, 1, 2], [0], [0]>} : vector<4x8x32xf32>, vector<4x32x8xf32>, vector<4x8x8xf32> -> vector<4x8x8xf32>
    "tpu.trace_stop"() : () -> ()
    %c0_6 = arith.constant 0 : index
    %c0_7 = arith.constant 0 : index
    %c0_8 = arith.constant 0 : index
    %c0_9 = arith.constant 0 : index
    %7 = vector.load %arg5[%c0_6, %c0_7, %c0_8, %c0_9] : memref<2x4x1x8xf32, #tpu.memory_space<vmem>>, vector<1x4x1x8xf32>
    %8 = vector.shape_cast %7 : vector<1x4x1x8xf32> to vector<4x1x8xf32>
    %9 = vector.broadcast %8 : vector<4x1x8xf32> to vector<4x8x8xf32>
    %10 = arith.addf %6, %9 : vector<4x8x8xf32>
    %c0_10 = arith.constant 0 : index
    %c0_11 = arith.constant 0 : index
    %c0_12 = arith.constant 0 : index
    %c0_13 = arith.constant 0 : index
    %11 = vector.load %arg3[%c0_10, %c0_11, %c0_12, %c0_13] : memref<2x4x32x8xf32, #tpu.memory_space<vmem>>, vector<1x4x32x8xf32>
    %12 = vector.shape_cast %11 : vector<1x4x32x8xf32> to vector<4x32x8xf32>
    "tpu.trace_start"() <{level = 10 : i32, message = "hsd,hde->hse"}> : () -> ()
    %cst_14 = arith.constant dense<0.000000e+00> : vector<4x8x8xf32>
    %13 = tpu.matmul %3, %12, %cst_14 {dimension_numbers = #tpu.dot_dimension_numbers<[2], [1], [1], [2], [0, 0, 0, 1, 1, 2], [0], [0]>} : vector<4x8x32xf32>, vector<4x32x8xf32>, vector<4x8x8xf32> -> vector<4x8x8xf32>
    "tpu.trace_stop"() : () -> ()
    %c0_15 = arith.constant 0 : index
    %c0_16 = arith.constant 0 : index
    %c0_17 = arith.constant 0 : index
    %c0_18 = arith.constant 0 : index
    %14 = vector.load %arg6[%c0_15, %c0_16, %c0_17, %c0_18] : memref<2x4x1x8xf32, #tpu.memory_space<vmem>>, vector<1x4x1x8xf32>
    %15 = vector.shape_cast %14 : vector<1x4x1x8xf32> to vector<4x1x8xf32>
    %16 = vector.broadcast %15 : vector<4x1x8xf32> to vector<4x8x8xf32>
    %17 = arith.addf %13, %16 : vector<4x8x8xf32>
    %c0_19 = arith.constant 0 : index
    %c0_20 = arith.constant 0 : index
    %c0_21 = arith.constant 0 : index
    %c0_22 = arith.constant 0 : index
    %18 = vector.load %arg4[%c0_19, %c0_20, %c0_21, %c0_22] : memref<2x4x32x8xf32, #tpu.memory_space<vmem>>, vector<1x4x32x8xf32>
    %19 = vector.shape_cast %18 : vector<1x4x32x8xf32> to vector<4x32x8xf32>
    "tpu.trace_start"() <{level = 10 : i32, message = "hsd,hde->hse"}> : () -> ()
    %cst_23 = arith.constant dense<0.000000e+00> : vector<4x8x8xf32>
    %20 = tpu.matmul %3, %19, %cst_23 {dimension_numbers = #tpu.dot_dimension_numbers<[2], [1], [1], [2], [0, 0, 0, 1, 1, 2], [0], [0]>} : vector<4x8x32xf32>, vector<4x32x8xf32>, vector<4x8x8xf32> -> vector<4x8x8xf32>
    "tpu.trace_stop"() : () -> ()
    %c0_24 = arith.constant 0 : index
    %c0_25 = arith.constant 0 : index
    %c0_26 = arith.constant 0 : index
    %c0_27 = arith.constant 0 : index
    %21 = vector.load %arg7[%c0_24, %c0_25, %c0_26, %c0_27] : memref<2x4x1x8xf32, #tpu.memory_space<vmem>>, vector<1x4x1x8xf32>
    %22 = vector.shape_cast %21 : vector<1x4x1x8xf32> to vector<4x1x8xf32>
    %23 = vector.broadcast %22 : vector<4x1x8xf32> to vector<4x8x8xf32>
    %24 = arith.addf %20, %23 : vector<4x8x8xf32>
    "tpu.trace_start"() <{level = 10 : i32, message = "hqe,hke->hqk"}> : () -> ()
    %cst_28 = arith.constant dense<0.000000e+00> : vector<4x8x8xf32>
    %25 = tpu.matmul %10, %17, %cst_28 {dimension_numbers = #tpu.dot_dimension_numbers<[2], [2], [1], [1], [0, 0, 0, 1, 1, 1], [0], [0]>} : vector<4x8x8xf32>, vector<4x8x8xf32>, vector<4x8x8xf32> -> vector<4x8x8xf32>
    "tpu.trace_stop"() : () -> ()
    %cst_29 = arith.constant 0.353553385 : f32
    %26 = vector.broadcast %cst_29 : f32 to vector<4x8x8xf32>
    %27 = arith.mulf %25, %26 : vector<4x8x8xf32>
    %cst_30 = arith.constant dense<0xFF800000> : vector<4x8xf32>
    %28 = vector.multi_reduction <maximumf>, %27, %cst_30 [2] : vector<4x8x8xf32> to vector<4x8xf32>
    %29 = vector.shape_cast %28 : vector<4x8xf32> to vector<4x8x1xf32>
    %30 = vector.broadcast %29 : vector<4x8x1xf32> to vector<4x8x8xf32>
    %31 = arith.subf %27, %30 : vector<4x8x8xf32>
    %32 = math.exp %31 : vector<4x8x8xf32>
    %cst_31 = arith.constant dense<0.000000e+00> : vector<4x8xf32>
    %33 = vector.multi_reduction <add>, %32, %cst_31 [2] : vector<4x8x8xf32> to vector<4x8xf32>
    %34 = vector.shape_cast %33 : vector<4x8xf32> to vector<4x8x1xf32>
    %35 = tpu.reciprocal %34 {approx = true} : vector<4x8x1xf32> -> vector<4x8x1xf32>
    %36 = arith.mulf %34, %35 : vector<4x8x1xf32>
    %cst_32 = arith.constant 2.000000e+00 : f32
    %37 = vector.broadcast %cst_32 : f32 to vector<4x8x1xf32>
    %38 = arith.subf %37, %36 : vector<4x8x1xf32>
    %39 = arith.mulf %35, %38 : vector<4x8x1xf32>
    %40 = vector.broadcast %39 : vector<4x8x1xf32> to vector<4x8x8xf32>
    %41 = arith.mulf %32, %40 : vector<4x8x8xf32>
    "tpu.trace_start"() <{level = 10 : i32, message = "hqk,hke->hqe"}> : () -> ()
    %cst_33 = arith.constant dense<0.000000e+00> : vector<4x8x8xf32>
    %42 = tpu.matmul %41, %24, %cst_33 {dimension_numbers = #tpu.dot_dimension_numbers<[2], [1], [1], [2], [0, 0, 0, 1, 1, 2], [0], [0]>} : vector<4x8x8xf32>, vector<4x8x8xf32>, vector<4x8x8xf32> -> vector<4x8x8xf32>
    "tpu.trace_stop"() : () -> ()
    %c0_34 = arith.constant 0 : index
    %c0_35 = arith.constant 0 : index
    %c0_36 = arith.constant 0 : index
    %c0_37 = arith.constant 0 : index
    %43 = vector.load %arg8[%c0_34, %c0_35, %c0_36, %c0_37] : memref<2x4x8x32xf32, #tpu.memory_space<vmem>>, vector<1x4x8x32xf32>
    %44 = vector.shape_cast %43 : vector<1x4x8x32xf32> to vector<4x8x32xf32>
    "tpu.trace_start"() <{level = 10 : i32, message = "hse,hed->hsd"}> : () -> ()
    %cst_38 = arith.constant dense<0.000000e+00> : vector<4x8x32xf32>
    %45 = tpu.matmul %42, %44, %cst_38 {dimension_numbers = #tpu.dot_dimension_numbers<[2], [1], [1], [2], [0, 0, 0, 1, 1, 2], [0], [0]>} : vector<4x8x8xf32>, vector<4x8x32xf32>, vector<4x8x32xf32> -> vector<4x8x32xf32>
    "tpu.trace_stop"() : () -> ()
    %cst_39 = arith.constant dense<0.000000e+00> : vector<8x32xf32>
    %46 = vector.multi_reduction <add>, %45, %cst_39 [0] : vector<4x8x32xf32> to vector<8x32xf32>
    %c0_40 = arith.constant 0 : index
    %c0_41 = arith.constant 0 : index
    %c0_42 = arith.constant 0 : index
    %47 = vector.load %arg9[%c0_40, %c0_41, %c0_42] : memref<2x1x32xf32, #tpu.memory_space<vmem>>, vector<1x1x32xf32>
    %48 = vector.shape_cast %47 : vector<1x1x32xf32> to vector<1x32xf32>
    %49 = vector.broadcast %48 : vector<1x32xf32> to vector<8x32xf32>
    %50 = arith.addf %46, %49 : vector<8x32xf32>
    %51 = arith.addf %1, %50 : vector<8x32xf32>
    %c0_43 = arith.constant 0 : index
    %c0_44 = arith.constant 0 : index
    %c0_45 = arith.constant 0 : index
    %52 = vector.load %arg10[%c0_43, %c0_44, %c0_45] : memref<2x1x32xf32, #tpu.memory_space<vmem>>, vector<1x1x32xf32>
    %53 = vector.shape_cast %52 : vector<1x1x32xf32> to vector<1x32xf32>
    %c0_46 = arith.constant 0 : index
    %c0_47 = arith.constant 0 : index
    %c0_48 = arith.constant 0 : index
    %54 = vector.load %arg11[%c0_46, %c0_47, %c0_48] : memref<2x1x32xf32, #tpu.memory_space<vmem>>, vector<1x1x32xf32>
    %55 = vector.shape_cast %54 : vector<1x1x32xf32> to vector<1x32xf32>
    %cst_49 = arith.constant dense<0.000000e+00> : vector<8xf32>
    %56 = vector.multi_reduction <add>, %51, %cst_49 [1] : vector<8x32xf32> to vector<8xf32>
    %57 = vector.shape_cast %56 : vector<8xf32> to vector<8x1xf32>
    %cst_50 = arith.constant 3.200000e+01 : f32
    %58 = vector.broadcast %cst_50 : f32 to vector<8x1xf32>
    %59 = arith.divf %57, %58 : vector<8x1xf32>
    %60 = vector.broadcast %59 : vector<8x1xf32> to vector<8x32xf32>
    %61 = arith.subf %51, %60 : vector<8x32xf32>
    %62 = vector.broadcast %59 : vector<8x1xf32> to vector<8x32xf32>
    %63 = arith.subf %51, %62 : vector<8x32xf32>
    %64 = arith.mulf %61, %63 : vector<8x32xf32>
    %cst_51 = arith.constant dense<0.000000e+00> : vector<8xf32>
    %65 = vector.multi_reduction <add>, %64, %cst_51 [1] : vector<8x32xf32> to vector<8xf32>
    %66 = vector.shape_cast %65 : vector<8xf32> to vector<8x1xf32>
    %cst_52 = arith.constant 3.200000e+01 : f32
    %67 = vector.broadcast %cst_52 : f32 to vector<8x1xf32>
    %68 = arith.divf %66, %67 : vector<8x1xf32>
    %69 = vector.broadcast %59 : vector<8x1xf32> to vector<8x32xf32>
    %70 = arith.subf %51, %69 : vector<8x32xf32>
    %cst_53 = arith.constant 9.99999974E-6 : f32
    %71 = vector.broadcast %cst_53 : f32 to vector<8x1xf32>
    %72 = arith.addf %68, %71 : vector<8x1xf32>
    %73 = math.rsqrt %72 : vector<8x1xf32>
    %74 = vector.broadcast %73 : vector<8x1xf32> to vector<8x32xf32>
    %75 = arith.mulf %70, %74 : vector<8x32xf32>
    %76 = vector.broadcast %53 : vector<1x32xf32> to vector<8x32xf32>
    %77 = arith.mulf %75, %76 : vector<8x32xf32>
    %78 = vector.broadcast %55 : vector<1x32xf32> to vector<8x32xf32>
    %79 = arith.addf %77, %78 : vector<8x32xf32>
    %c0_54 = arith.constant 0 : index
    %c0_55 = arith.constant 0 : index
    %c0_56 = arith.constant 0 : index
    %80 = vector.load %arg12[%c0_54, %c0_55, %c0_56] : memref<2x32x64xf32, #tpu.memory_space<vmem>>, vector<1x32x64xf32>
    %81 = vector.shape_cast %80 : vector<1x32x64xf32> to vector<32x64xf32>
    %cst_57 = arith.constant dense<0.000000e+00> : vector<8x64xf32>
    %82 = tpu.matmul %79, %81, %cst_57 {dimension_numbers = #tpu.dot_dimension_numbers<[1], [0], [0], [1], [0, 0, 1, 1], [], []>} : vector<8x32xf32>, vector<32x64xf32>, vector<8x64xf32> -> vector<8x64xf32>
    %c0_58 = arith.constant 0 : index
    %c0_59 = arith.constant 0 : index
    %c0_60 = arith.constant 0 : index
    %83 = vector.load %arg13[%c0_58, %c0_59, %c0_60] : memref<2x1x64xf32, #tpu.memory_space<vmem>>, vector<1x1x64xf32>
    %84 = vector.shape_cast %83 : vector<1x1x64xf32> to vector<1x64xf32>
    %85 = vector.broadcast %84 : vector<1x64xf32> to vector<8x64xf32>
    %86 = arith.addf %82, %85 : vector<8x64xf32>
    %cst_61 = arith.constant 0.000000e+00 : f32
    %87 = vector.broadcast %cst_61 : f32 to vector<8x64xf32>
    %88 = arith.maximumf %86, %87 : vector<8x64xf32>
    %c0_62 = arith.constant 0 : index
    %c0_63 = arith.constant 0 : index
    %c0_64 = arith.constant 0 : index
    %89 = vector.load %arg14[%c0_62, %c0_63, %c0_64] : memref<2x64x32xf32, #tpu.memory_space<vmem>>, vector<1x64x32xf32>
    %90 = vector.shape_cast %89 : vector<1x64x32xf32> to vector<64x32xf32>
    %cst_65 = arith.constant dense<0.000000e+00> : vector<8x32xf32>
    %91 = tpu.matmul %88, %90, %cst_65 {dimension_numbers = #tpu.dot_dimension_numbers<[1], [0], [0], [1], [0, 0, 1, 1], [], []>} : vector<8x64xf32>, vector<64x32xf32>, vector<8x32xf32> -> vector<8x32xf32>
    %c0_66 = arith.constant 0 : index
    %c0_67 = arith.constant 0 : index
    %c0_68 = arith.constant 0 : index
    %92 = vector.load %arg15[%c0_66, %c0_67, %c0_68] : memref<2x1x32xf32, #tpu.memory_space<vmem>>, vector<1x1x32xf32>
    %93 = vector.shape_cast %92 : vector<1x1x32xf32> to vector<1x32xf32>
    %94 = vector.broadcast %93 : vector<1x32xf32> to vector<8x32xf32>
    %95 = arith.addf %91, %94 : vector<8x32xf32>
    %96 = arith.addf %79, %95 : vector<8x32xf32>
    %c0_69 = arith.constant 0 : index
    %c0_70 = arith.constant 0 : index
    %c0_71 = arith.constant 0 : index
    %97 = vector.load %arg16[%c0_69, %c0_70, %c0_71] : memref<2x1x32xf32, #tpu.memory_space<vmem>>, vector<1x1x32xf32>
    %98 = vector.shape_cast %97 : vector<1x1x32xf32> to vector<1x32xf32>
    %c0_72 = arith.constant 0 : index
    %c0_73 = arith.constant 0 : index
    %c0_74 = arith.constant 0 : index
    %99 = vector.load %arg17[%c0_72, %c0_73, %c0_74] : memref<2x1x32xf32, #tpu.memory_space<vmem>>, vector<1x1x32xf32>
    %100 = vector.shape_cast %99 : vector<1x1x32xf32> to vector<1x32xf32>
    %cst_75 = arith.constant dense<0.000000e+00> : vector<8xf32>
    %101 = vector.multi_reduction <add>, %96, %cst_75 [1] : vector<8x32xf32> to vector<8xf32>
    %102 = vector.shape_cast %101 : vector<8xf32> to vector<8x1xf32>
    %cst_76 = arith.constant 3.200000e+01 : f32
    %103 = vector.broadcast %cst_76 : f32 to vector<8x1xf32>
    %104 = arith.divf %102, %103 : vector<8x1xf32>
    %105 = vector.broadcast %104 : vector<8x1xf32> to vector<8x32xf32>
    %106 = arith.subf %96, %105 : vector<8x32xf32>
    %107 = vector.broadcast %104 : vector<8x1xf32> to vector<8x32xf32>
    %108 = arith.subf %96, %107 : vector<8x32xf32>
    %109 = arith.mulf %106, %108 : vector<8x32xf32>
    %cst_77 = arith.constant dense<0.000000e+00> : vector<8xf32>
    %110 = vector.multi_reduction <add>, %109, %cst_77 [1] : vector<8x32xf32> to vector<8xf32>
    %111 = vector.shape_cast %110 : vector<8xf32> to vector<8x1xf32>
    %cst_78 = arith.constant 3.200000e+01 : f32
    %112 = vector.broadcast %cst_78 : f32 to vector<8x1xf32>
    %113 = arith.divf %111, %112 : vector<8x1xf32>
    %114 = vector.broadcast %104 : vector<8x1xf32> to vector<8x32xf32>
    %115 = arith.subf %96, %114 : vector<8x32xf32>
    %cst_79 = arith.constant 9.99999974E-6 : f32
    %116 = vector.broadcast %cst_79 : f32 to vector<8x1xf32>
    %117 = arith.addf %113, %116 : vector<8x1xf32>
    %118 = math.rsqrt %117 : vector<8x1xf32>
    %119 = vector.broadcast %118 : vector<8x1xf32> to vector<8x32xf32>
    %120 = arith.mulf %115, %119 : vector<8x32xf32>
    %121 = vector.broadcast %98 : vector<1x32xf32> to vector<8x32xf32>
    %122 = arith.mulf %120, %121 : vector<8x32xf32>
    %123 = vector.broadcast %100 : vector<1x32xf32> to vector<8x32xf32>
    %124 = arith.addf %122, %123 : vector<8x32xf32>
    %125 = vector.shape_cast %124 : vector<8x32xf32> to vector<1x8x32xf32>
    %126 = vector.broadcast %125 : vector<1x8x32xf32> to vector<4x8x32xf32>
    %c1 = arith.constant 1 : index
    %c0_80 = arith.constant 0 : index
    %c0_81 = arith.constant 0 : index
    %c0_82 = arith.constant 0 : index
    %127 = vector.load %arg2[%c1, %c0_80, %c0_81, %c0_82] : memref<2x4x32x8xf32, #tpu.memory_space<vmem>>, vector<1x4x32x8xf32>
    %128 = vector.shape_cast %127 : vector<1x4x32x8xf32> to vector<4x32x8xf32>
    "tpu.trace_start"() <{level = 10 : i32, message = "hsd,hde->hse"}> : () -> ()
    %cst_83 = arith.constant dense<0.000000e+00> : vector<4x8x8xf32>
    %129 = tpu.matmul %126, %128, %cst_83 {dimension_numbers = #tpu.dot_dimension_numbers<[2], [1], [1], [2], [0, 0, 0, 1, 1, 2], [0], [0]>} : vector<4x8x32xf32>, vector<4x32x8xf32>, vector<4x8x8xf32> -> vector<4x8x8xf32>
    "tpu.trace_stop"() : () -> ()
    %c1_84 = arith.constant 1 : index
    %c0_85 = arith.constant 0 : index
    %c0_86 = arith.constant 0 : index
    %c0_87 = arith.constant 0 : index
    %130 = vector.load %arg5[%c1_84, %c0_85, %c0_86, %c0_87] : memref<2x4x1x8xf32, #tpu.memory_space<vmem>>, vector<1x4x1x8xf32>
    %131 = vector.shape_cast %130 : vector<1x4x1x8xf32> to vector<4x1x8xf32>
    %132 = vector.broadcast %131 : vector<4x1x8xf32> to vector<4x8x8xf32>
    %133 = arith.addf %129, %132 : vector<4x8x8xf32>
    %c1_88 = arith.constant 1 : index
    %c0_89 = arith.constant 0 : index
    %c0_90 = arith.constant 0 : index
    %c0_91 = arith.constant 0 : index
    %134 = vector.load %arg3[%c1_88, %c0_89, %c0_90, %c0_91] : memref<2x4x32x8xf32, #tpu.memory_space<vmem>>, vector<1x4x32x8xf32>
    %135 = vector.shape_cast %134 : vector<1x4x32x8xf32> to vector<4x32x8xf32>
    "tpu.trace_start"() <{level = 10 : i32, message = "hsd,hde->hse"}> : () -> ()
    %cst_92 = arith.constant dense<0.000000e+00> : vector<4x8x8xf32>
    %136 = tpu.matmul %126, %135, %cst_92 {dimension_numbers = #tpu.dot_dimension_numbers<[2], [1], [1], [2], [0, 0, 0, 1, 1, 2], [0], [0]>} : vector<4x8x32xf32>, vector<4x32x8xf32>, vector<4x8x8xf32> -> vector<4x8x8xf32>
    "tpu.trace_stop"() : () -> ()
    %c1_93 = arith.constant 1 : index
    %c0_94 = arith.constant 0 : index
    %c0_95 = arith.constant 0 : index
    %c0_96 = arith.constant 0 : index
    %137 = vector.load %arg6[%c1_93, %c0_94, %c0_95, %c0_96] : memref<2x4x1x8xf32, #tpu.memory_space<vmem>>, vector<1x4x1x8xf32>
    %138 = vector.shape_cast %137 : vector<1x4x1x8xf32> to vector<4x1x8xf32>
    %139 = vector.broadcast %138 : vector<4x1x8xf32> to vector<4x8x8xf32>
    %140 = arith.addf %136, %139 : vector<4x8x8xf32>
    %c1_97 = arith.constant 1 : index
    %c0_98 = arith.constant 0 : index
    %c0_99 = arith.constant 0 : index
    %c0_100 = arith.constant 0 : index
    %141 = vector.load %arg4[%c1_97, %c0_98, %c0_99, %c0_100] : memref<2x4x32x8xf32, #tpu.memory_space<vmem>>, vector<1x4x32x8xf32>
    %142 = vector.shape_cast %141 : vector<1x4x32x8xf32> to vector<4x32x8xf32>
    "tpu.trace_start"() <{level = 10 : i32, message = "hsd,hde->hse"}> : () -> ()
    %cst_101 = arith.constant dense<0.000000e+00> : vector<4x8x8xf32>
    %143 = tpu.matmul %126, %142, %cst_101 {dimension_numbers = #tpu.dot_dimension_numbers<[2], [1], [1], [2], [0, 0, 0, 1, 1, 2], [0], [0]>} : vector<4x8x32xf32>, vector<4x32x8xf32>, vector<4x8x8xf32> -> vector<4x8x8xf32>
    "tpu.trace_stop"() : () -> ()
    %c1_102 = arith.constant 1 : index
    %c0_103 = arith.constant 0 : index
    %c0_104 = arith.constant 0 : index
    %c0_105 = arith.constant 0 : index
    %144 = vector.load %arg7[%c1_102, %c0_103, %c0_104, %c0_105] : memref<2x4x1x8xf32, #tpu.memory_space<vmem>>, vector<1x4x1x8xf32>
    %145 = vector.shape_cast %144 : vector<1x4x1x8xf32> to vector<4x1x8xf32>
    %146 = vector.broadcast %145 : vector<4x1x8xf32> to vector<4x8x8xf32>
    %147 = arith.addf %143, %146 : vector<4x8x8xf32>
    "tpu.trace_start"() <{level = 10 : i32, message = "hqe,hke->hqk"}> : () -> ()
    %cst_106 = arith.constant dense<0.000000e+00> : vector<4x8x8xf32>
    %148 = tpu.matmul %133, %140, %cst_106 {dimension_numbers = #tpu.dot_dimension_numbers<[2], [2], [1], [1], [0, 0, 0, 1, 1, 1], [0], [0]>} : vector<4x8x8xf32>, vector<4x8x8xf32>, vector<4x8x8xf32> -> vector<4x8x8xf32>
    "tpu.trace_stop"() : () -> ()
    %cst_107 = arith.constant 0.353553385 : f32
    %149 = vector.broadcast %cst_107 : f32 to vector<4x8x8xf32>
    %150 = arith.mulf %148, %149 : vector<4x8x8xf32>
    %cst_108 = arith.constant dense<0xFF800000> : vector<4x8xf32>
    %151 = vector.multi_reduction <maximumf>, %150, %cst_108 [2] : vector<4x8x8xf32> to vector<4x8xf32>
    %152 = vector.shape_cast %151 : vector<4x8xf32> to vector<4x8x1xf32>
    %153 = vector.broadcast %152 : vector<4x8x1xf32> to vector<4x8x8xf32>
    %154 = arith.subf %150, %153 : vector<4x8x8xf32>
    %155 = math.exp %154 : vector<4x8x8xf32>
    %cst_109 = arith.constant dense<0.000000e+00> : vector<4x8xf32>
    %156 = vector.multi_reduction <add>, %155, %cst_109 [2] : vector<4x8x8xf32> to vector<4x8xf32>
    %157 = vector.shape_cast %156 : vector<4x8xf32> to vector<4x8x1xf32>
    %158 = tpu.reciprocal %157 {approx = true} : vector<4x8x1xf32> -> vector<4x8x1xf32>
    %159 = arith.mulf %157, %158 : vector<4x8x1xf32>
    %cst_110 = arith.constant 2.000000e+00 : f32
    %160 = vector.broadcast %cst_110 : f32 to vector<4x8x1xf32>
    %161 = arith.subf %160, %159 : vector<4x8x1xf32>
    %162 = arith.mulf %158, %161 : vector<4x8x1xf32>
    %163 = vector.broadcast %162 : vector<4x8x1xf32> to vector<4x8x8xf32>
    %164 = arith.mulf %155, %163 : vector<4x8x8xf32>
    "tpu.trace_start"() <{level = 10 : i32, message = "hqk,hke->hqe"}> : () -> ()
    %cst_111 = arith.constant dense<0.000000e+00> : vector<4x8x8xf32>
    %165 = tpu.matmul %164, %147, %cst_111 {dimension_numbers = #tpu.dot_dimension_numbers<[2], [1], [1], [2], [0, 0, 0, 1, 1, 2], [0], [0]>} : vector<4x8x8xf32>, vector<4x8x8xf32>, vector<4x8x8xf32> -> vector<4x8x8xf32>
    "tpu.trace_stop"() : () -> ()
    %c1_112 = arith.constant 1 : index
    %c0_113 = arith.constant 0 : index
    %c0_114 = arith.constant 0 : index
    %c0_115 = arith.constant 0 : index
    %166 = vector.load %arg8[%c1_112, %c0_113, %c0_114, %c0_115] : memref<2x4x8x32xf32, #tpu.memory_space<vmem>>, vector<1x4x8x32xf32>
    %167 = vector.shape_cast %166 : vector<1x4x8x32xf32> to vector<4x8x32xf32>
    "tpu.trace_start"() <{level = 10 : i32, message = "hse,hed->hsd"}> : () -> ()
    %cst_116 = arith.constant dense<0.000000e+00> : vector<4x8x32xf32>
    %168 = tpu.matmul %165, %167, %cst_116 {dimension_numbers = #tpu.dot_dimension_numbers<[2], [1], [1], [2], [0, 0, 0, 1, 1, 2], [0], [0]>} : vector<4x8x8xf32>, vector<4x8x32xf32>, vector<4x8x32xf32> -> vector<4x8x32xf32>
    "tpu.trace_stop"() : () -> ()
    %cst_117 = arith.constant dense<0.000000e+00> : vector<8x32xf32>
    %169 = vector.multi_reduction <add>, %168, %cst_117 [0] : vector<4x8x32xf32> to vector<8x32xf32>
    %c1_118 = arith.constant 1 : index
    %c0_119 = arith.constant 0 : index
    %c0_120 = arith.constant 0 : index
    %170 = vector.load %arg9[%c1_118, %c0_119, %c0_120] : memref<2x1x32xf32, #tpu.memory_space<vmem>>, vector<1x1x32xf32>
    %171 = vector.shape_cast %170 : vector<1x1x32xf32> to vector<1x32xf32>
    %172 = vector.broadcast %171 : vector<1x32xf32> to vector<8x32xf32>
    %173 = arith.addf %169, %172 : vector<8x32xf32>
    %174 = arith.addf %124, %173 : vector<8x32xf32>
    %c1_121 = arith.constant 1 : index
    %c0_122 = arith.constant 0 : index
    %c0_123 = arith.constant 0 : index
    %175 = vector.load %arg10[%c1_121, %c0_122, %c0_123] : memref<2x1x32xf32, #tpu.memory_space<vmem>>, vector<1x1x32xf32>
    %176 = vector.shape_cast %175 : vector<1x1x32xf32> to vector<1x32xf32>
    %c1_124 = arith.constant 1 : index
    %c0_125 = arith.constant 0 : index
    %c0_126 = arith.constant 0 : index
    %177 = vector.load %arg11[%c1_124, %c0_125, %c0_126] : memref<2x1x32xf32, #tpu.memory_space<vmem>>, vector<1x1x32xf32>
    %178 = vector.shape_cast %177 : vector<1x1x32xf32> to vector<1x32xf32>
    %cst_127 = arith.constant dense<0.000000e+00> : vector<8xf32>
    %179 = vector.multi_reduction <add>, %174, %cst_127 [1] : vector<8x32xf32> to vector<8xf32>
    %180 = vector.shape_cast %179 : vector<8xf32> to vector<8x1xf32>
    %cst_128 = arith.constant 3.200000e+01 : f32
    %181 = vector.broadcast %cst_128 : f32 to vector<8x1xf32>
    %182 = arith.divf %180, %181 : vector<8x1xf32>
    %183 = vector.broadcast %182 : vector<8x1xf32> to vector<8x32xf32>
    %184 = arith.subf %174, %183 : vector<8x32xf32>
    %185 = vector.broadcast %182 : vector<8x1xf32> to vector<8x32xf32>
    %186 = arith.subf %174, %185 : vector<8x32xf32>
    %187 = arith.mulf %184, %186 : vector<8x32xf32>
    %cst_129 = arith.constant dense<0.000000e+00> : vector<8xf32>
    %188 = vector.multi_reduction <add>, %187, %cst_129 [1] : vector<8x32xf32> to vector<8xf32>
    %189 = vector.shape_cast %188 : vector<8xf32> to vector<8x1xf32>
    %cst_130 = arith.constant 3.200000e+01 : f32
    %190 = vector.broadcast %cst_130 : f32 to vector<8x1xf32>
    %191 = arith.divf %189, %190 : vector<8x1xf32>
    %192 = vector.broadcast %182 : vector<8x1xf32> to vector<8x32xf32>
    %193 = arith.subf %174, %192 : vector<8x32xf32>
    %cst_131 = arith.constant 9.99999974E-6 : f32
    %194 = vector.broadcast %cst_131 : f32 to vector<8x1xf32>
    %195 = arith.addf %191, %194 : vector<8x1xf32>
    %196 = math.rsqrt %195 : vector<8x1xf32>
    %197 = vector.broadcast %196 : vector<8x1xf32> to vector<8x32xf32>
    %198 = arith.mulf %193, %197 : vector<8x32xf32>
    %199 = vector.broadcast %176 : vector<1x32xf32> to vector<8x32xf32>
    %200 = arith.mulf %198, %199 : vector<8x32xf32>
    %201 = vector.broadcast %178 : vector<1x32xf32> to vector<8x32xf32>
    %202 = arith.addf %200, %201 : vector<8x32xf32>
    %c1_132 = arith.constant 1 : index
    %c0_133 = arith.constant 0 : index
    %c0_134 = arith.constant 0 : index
    %203 = vector.load %arg12[%c1_132, %c0_133, %c0_134] : memref<2x32x64xf32, #tpu.memory_space<vmem>>, vector<1x32x64xf32>
    %204 = vector.shape_cast %203 : vector<1x32x64xf32> to vector<32x64xf32>
    %cst_135 = arith.constant dense<0.000000e+00> : vector<8x64xf32>
    %205 = tpu.matmul %202, %204, %cst_135 {dimension_numbers = #tpu.dot_dimension_numbers<[1], [0], [0], [1], [0, 0, 1, 1], [], []>} : vector<8x32xf32>, vector<32x64xf32>, vector<8x64xf32> -> vector<8x64xf32>
    %c1_136 = arith.constant 1 : index
    %c0_137 = arith.constant 0 : index
    %c0_138 = arith.constant 0 : index
    %206 = vector.load %arg13[%c1_136, %c0_137, %c0_138] : memref<2x1x64xf32, #tpu.memory_space<vmem>>, vector<1x1x64xf32>
    %207 = vector.shape_cast %206 : vector<1x1x64xf32> to vector<1x64xf32>
    %208 = vector.broadcast %207 : vector<1x64xf32> to vector<8x64xf32>
    %209 = arith.addf %205, %208 : vector<8x64xf32>
    %cst_139 = arith.constant 0.000000e+00 : f32
    %210 = vector.broadcast %cst_139 : f32 to vector<8x64xf32>
    %211 = arith.maximumf %209, %210 : vector<8x64xf32>
    %c1_140 = arith.constant 1 : index
    %c0_141 = arith.constant 0 : index
    %c0_142 = arith.constant 0 : index
    %212 = vector.load %arg14[%c1_140, %c0_141, %c0_142] : memref<2x64x32xf32, #tpu.memory_space<vmem>>, vector<1x64x32xf32>
    %213 = vector.shape_cast %212 : vector<1x64x32xf32> to vector<64x32xf32>
    %cst_143 = arith.constant dense<0.000000e+00> : vector<8x32xf32>
    %214 = tpu.matmul %211, %213, %cst_143 {dimension_numbers = #tpu.dot_dimension_numbers<[1], [0], [0], [1], [0, 0, 1, 1], [], []>} : vector<8x64xf32>, vector<64x32xf32>, vector<8x32xf32> -> vector<8x32xf32>
    %c1_144 = arith.constant 1 : index
    %c0_145 = arith.constant 0 : index
    %c0_146 = arith.constant 0 : index
    %215 = vector.load %arg15[%c1_144, %c0_145, %c0_146] : memref<2x1x32xf32, #tpu.memory_space<vmem>>, vector<1x1x32xf32>
    %216 = vector.shape_cast %215 : vector<1x1x32xf32> to vector<1x32xf32>
    %217 = vector.broadcast %216 : vector<1x32xf32> to vector<8x32xf32>
    %218 = arith.addf %214, %217 : vector<8x32xf32>
    %219 = arith.addf %202, %218 : vector<8x32xf32>
    %c1_147 = arith.constant 1 : index
    %c0_148 = arith.constant 0 : index
    %c0_149 = arith.constant 0 : index
    %220 = vector.load %arg16[%c1_147, %c0_148, %c0_149] : memref<2x1x32xf32, #tpu.memory_space<vmem>>, vector<1x1x32xf32>
    %221 = vector.shape_cast %220 : vector<1x1x32xf32> to vector<1x32xf32>
    %c1_150 = arith.constant 1 : index
    %c0_151 = arith.constant 0 : index
    %c0_152 = arith.constant 0 : index
    %222 = vector.load %arg17[%c1_150, %c0_151, %c0_152] : memref<2x1x32xf32, #tpu.memory_space<vmem>>, vector<1x1x32xf32>
    %223 = vector.shape_cast %222 : vector<1x1x32xf32> to vector<1x32xf32>
    %cst_153 = arith.constant dense<0.000000e+00> : vector<8xf32>
    %224 = vector.multi_reduction <add>, %219, %cst_153 [1] : vector<8x32xf32> to vector<8xf32>
    %225 = vector.shape_cast %224 : vector<8xf32> to vector<8x1xf32>
    %cst_154 = arith.constant 3.200000e+01 : f32
    %226 = vector.broadcast %cst_154 : f32 to vector<8x1xf32>
    %227 = arith.divf %225, %226 : vector<8x1xf32>
    %228 = vector.broadcast %227 : vector<8x1xf32> to vector<8x32xf32>
    %229 = arith.subf %219, %228 : vector<8x32xf32>
    %230 = vector.broadcast %227 : vector<8x1xf32> to vector<8x32xf32>
    %231 = arith.subf %219, %230 : vector<8x32xf32>
    %232 = arith.mulf %229, %231 : vector<8x32xf32>
    %cst_155 = arith.constant dense<0.000000e+00> : vector<8xf32>
    %233 = vector.multi_reduction <add>, %232, %cst_155 [1] : vector<8x32xf32> to vector<8xf32>
    %234 = vector.shape_cast %233 : vector<8xf32> to vector<8x1xf32>
    %cst_156 = arith.constant 3.200000e+01 : f32
    %235 = vector.broadcast %cst_156 : f32 to vector<8x1xf32>
    %236 = arith.divf %234, %235 : vector<8x1xf32>
    %237 = vector.broadcast %227 : vector<8x1xf32> to vector<8x32xf32>
    %238 = arith.subf %219, %237 : vector<8x32xf32>
    %cst_157 = arith.constant 9.99999974E-6 : f32
    %239 = vector.broadcast %cst_157 : f32 to vector<8x1xf32>
    %240 = arith.addf %236, %239 : vector<8x1xf32>
    %241 = math.rsqrt %240 : vector<8x1xf32>
    %242 = vector.broadcast %241 : vector<8x1xf32> to vector<8x32xf32>
    %243 = arith.mulf %238, %242 : vector<8x32xf32>
    %244 = vector.broadcast %221 : vector<1x32xf32> to vector<8x32xf32>
    %245 = arith.mulf %243, %244 : vector<8x32xf32>
    %246 = vector.broadcast %223 : vector<1x32xf32> to vector<8x32xf32>
    %247 = arith.addf %245, %246 : vector<8x32xf32>
    %c0_158 = arith.constant 0 : index
    %c0_159 = arith.constant 0 : index
    %c0_160 = arith.constant 0 : index
    %248 = vector.load %arg18[%c0_158, %c0_159, %c0_160] : memref<1x8x32xf32, #tpu.memory_space<vmem>>, vector<1x8x32xf32>
    %249 = vector.shape_cast %248 : vector<1x8x32xf32> to vector<8x32xf32>
    %250 = vector.shape_cast %247 : vector<8x32xf32> to vector<1x8x32xf32>
    tpu.vector_store %arg18[%c0_158, %c0_159, %c0_160], %250 {strides = array<i32>} : memref<1x8x32xf32, #tpu.memory_space<vmem>>, vector<1x8x32xf32>,
    return
  }
  func.func @transform_0(%arg0: i32) -> (i32, i32, i32) {
    %c0_i32 = arith.constant 0 : i32
    %c0_i32_0 = arith.constant 0 : i32
    %c0_i32_1 = arith.constant 0 : i32
    return %arg0, %c0_i32, %c0_i32_0 : i32, i32, i32
  }
  func.func @transform_1(%arg0: i32) -> (i32, i32, i32, i32) {
    %c0_i32 = arith.constant 0 : i32
    %c0_i32_0 = arith.constant 0 : i32
    %c0_i32_1 = arith.constant 0 : i32
    %c0_i32_2 = arith.constant 0 : i32
    %c0_i32_3 = arith.constant 0 : i32
    return %c0_i32, %c0_i32_0, %c0_i32_1, %c0_i32_2 : i32, i32, i32, i32
  }
  func.func @transform_2(%arg0: i32) -> (i32, i32, i32, i32) {
    %c0_i32 = arith.constant 0 : i32
    %c0_i32_0 = arith.constant 0 : i32
    %c0_i32_1 = arith.constant 0 : i32
    %c0_i32_2 = arith.constant 0 : i32
    %c0_i32_3 = arith.constant 0 : i32
    return %c0_i32, %c0_i32_0, %c0_i32_1, %c0_i32_2 : i32, i32, i32, i32
  }
  func.func @transform_3(%arg0: i32) -> (i32, i32, i32, i32) {
    %c0_i32 = arith.constant 0 : i32
    %c0_i32_0 = arith.constant 0 : i32
    %c0_i32_1 = arith.constant 0 : i32
    %c0_i32_2 = arith.constant 0 : i32
    %c0_i32_3 = arith.constant 0 : i32
    return %c0_i32, %c0_i32_0, %c0_i32_1, %c0_i32_2 : i32, i32, i32, i32
  }
  func.func @transform_4(%arg0: i32) -> (i32, i32, i32, i32) {
    %c0_i32 = arith.constant 0 : i32
    %c0_i32_0 = arith.constant 0 : i32
    %c0_i32_1 = arith.constant 0 : i32
    %c0_i32_2 = arith.constant 0 : i32
    %c0_i32_3 = arith.constant 0 : i32
    return %c0_i32, %c0_i32_0, %c0_i32_1, %c0_i32_2 : i32, i32, i32, i32
  }
  func.func @transform_5(%arg0: i32) -> (i32, i32, i32, i32) {
    %c0_i32 = arith.constant 0 : i32
    %c0_i32_0 = arith.constant 0 : i32
    %c0_i32_1 = arith.constant 0 : i32
    %c0_i32_2 = arith.constant 0 : i32
    %c0_i32_3 = arith.constant 0 : i32
    return %c0_i32, %c0_i32_0, %c0_i32_1, %c0_i32_2 : i32, i32, i32, i32
  }
  func.func @transform_6(%arg0: i32) -> (i32, i32, i32, i32) {
    %c0_i32 = arith.constant 0 : i32
    %c0_i32_0 = arith.constant 0 : i32
    %c0_i32_1 = arith.constant 0 : i32
    %c0_i32_2 = arith.constant 0 : i32
    %c0_i32_3 = arith.constant 0 : i32
    return %c0_i32, %c0_i32_0, %c0_i32_1, %c0_i32_2 : i32, i32, i32, i32
  }
  func.func @transform_7(%arg0: i32) -> (i32, i32, i32, i32) {
    %c0_i32 = arith.constant 0 : i32
    %c0_i32_0 = arith.constant 0 : i32
    %c0_i32_1 = arith.constant 0 : i32
    %c0_i32_2 = arith.constant 0 : i32
    %c0_i32_3 = arith.constant 0 : i32
    return %c0_i32, %c0_i32_0, %c0_i32_1, %c0_i32_2 : i32, i32, i32, i32
  }
  func.func @transform_8(%arg0: i32) -> (i32, i32, i32) {
    %c0_i32 = arith.constant 0 : i32
    %c0_i32_0 = arith.constant 0 : i32
    %c0_i32_1 = arith.constant 0 : i32
    %c0_i32_2 = arith.constant 0 : i32
    return %c0_i32, %c0_i32_0, %c0_i32_1 : i32, i32, i32
  }
  func.func @transform_9(%arg0: i32) -> (i32, i32, i32) {
    %c0_i32 = arith.constant 0 : i32
    %c0_i32_0 = arith.constant 0 : i32
    %c0_i32_1 = arith.constant 0 : i32
    %c0_i32_2 = arith.constant 0 : i32
    return %c0_i32, %c0_i32_0, %c0_i32_1 : i32, i32, i32
  }
  func.func @transform_10(%arg0: i32) -> (i32, i32, i32) {
    %c0_i32 = arith.constant 0 : i32
    %c0_i32_0 = arith.constant 0 : i32
    %c0_i32_1 = arith.constant 0 : i32
    %c0_i32_2 = arith.constant 0 : i32
    return %c0_i32, %c0_i32_0, %c0_i32_1 : i32, i32, i32
  }
  func.func @transform_11(%arg0: i32) -> (i32, i32, i32) {
    %c0_i32 = arith.constant 0 : i32
    %c0_i32_0 = arith.constant 0 : i32
    %c0_i32_1 = arith.constant 0 : i32
    %c0_i32_2 = arith.constant 0 : i32
    return %c0_i32, %c0_i32_0, %c0_i32_1 : i32, i32, i32
  }
  func.func @transform_12(%arg0: i32) -> (i32, i32, i32) {
    %c0_i32 = arith.constant 0 : i32
    %c0_i32_0 = arith.constant 0 : i32
    %c0_i32_1 = arith.constant 0 : i32
    %c0_i32_2 = arith.constant 0 : i32
    return %c0_i32, %c0_i32_0, %c0_i32_1 : i32, i32, i32
  }
  func.func @transform_13(%arg0: i32) -> (i32, i32, i32) {
    %c0_i32 = arith.constant 0 : i32
    %c0_i32_0 = arith.constant 0 : i32
    %c0_i32_1 = arith.constant 0 : i32
    %c0_i32_2 = arith.constant 0 : i32
    return %c0_i32, %c0_i32_0, %c0_i32_1 : i32, i32, i32
  }
  func.func @transform_14(%arg0: i32) -> (i32, i32, i32) {
    %c0_i32 = arith.constant 0 : i32
    %c0_i32_0 = arith.constant 0 : i32
    %c0_i32_1 = arith.constant 0 : i32
    %c0_i32_2 = arith.constant 0 : i32
    return %c0_i32, %c0_i32_0, %c0_i32_1 : i32, i32, i32
  }
  func.func @transform_15(%arg0: i32) -> (i32, i32, i32) {
    %c0_i32 = arith.constant 0 : i32
    %c0_i32_0 = arith.constant 0 : i32
    %c0_i32_1 = arith.constant 0 : i32
    %c0_i32_2 = arith.constant 0 : i32
    return %c0_i32, %c0_i32_0, %c0_i32_1 : i32, i32, i32
  }
  func.func @transform_16(%arg0: i32) -> (i32, i32, i32) {
    %c0_i32 = arith.constant 0 : i32
    %c0_i32_0 = arith.constant 0 : i32
    %c0_i32_1 = arith.constant 0 : i32
    %c0_i32_2 = arith.constant 0 : i32
    return %c0_i32, %c0_i32_0, %c0_i32_1 : i32, i32, i32
  }
  func.func @transform_17(%arg0: i32) -> (i32, i32, i32) {
    %c0_i32 = arith.constant 0 : i32
    %c0_i32_0 = arith.constant 0 : i32
    %c0_i32_1 = arith.constant 0 : i32
    return %arg0, %c0_i32, %c0_i32_0 : i32, i32, i32
  }
}

</mosaic_0001>

<llo_original>
// kernel: tpu_custom_call.1
$region0: #{tpu_custom_call.1}
  #allocation0 [shape = 'u32[]', space=smem, size = 0x4, offset = 0x4, fixed_abs, tag = 'smem constant byte address 0x4 - core index']
  #allocation1 [shape = 'u32[72,128]{1,0:T(1,128)}', space=vmem, size = 0x9000, scoped, tag = 'internal scratch']
  %s0 = inlined_call_operand.vmem [shape: f32[2,8,32], index: 0, kind: input, shape index: {}]
  %s1 = inlined_call_operand.vmem [shape: f32[2,4,32,8], index: 1, kind: input, shape index: {}]
  %s2 = inlined_call_operand.vmem [shape: f32[2,4,32,8], index: 2, kind: input, shape index: {}]
  %s3 = inlined_call_operand.vmem [shape: f32[2,4,32,8], index: 3, kind: input, shape index: {}]
  %s4 = inlined_call_operand.vmem [shape: f32[2,4,1,8], index: 4, kind: input, shape index: {}]
  %s5 = inlined_call_operand.vmem [shape: f32[2,4,1,8], index: 5, kind: input, shape index: {}]
  %s6 = inlined_call_operand.vmem [shape: f32[2,4,1,8], index: 6, kind: input, shape index: {}]
  %s7 = inlined_call_operand.vmem [shape: f32[2,4,8,32], index: 7, kind: input, shape index: {}]
  %s8 = inlined_call_operand.vmem [shape: f32[2,1,32], index: 8, kind: input, shape index: {}]
  %s9 = inlined_call_operand.vmem [shape: f32[2,1,32], index: 9, kind: input, shape index: {}]
  %s10 = inlined_call_operand.vmem [shape: f32[2,1,32], index: 10, kind: input, shape index: {}]
  %s11 = inlined_call_operand.vmem [shape: f32[2,32,64], index: 11, kind: input, shape index: {}]
  %s12 = inlined_call_operand.vmem [shape: f32[2,1,64], index: 12, kind: input, shape index: {}]
  %s13 = inlined_call_operand.vmem [shape: f32[2,64,32], index: 13, kind: input, shape index: {}]
  %s14 = inlined_call_operand.vmem [shape: f32[2,1,32], index: 14, kind: input, shape index: {}]
  %s15 = inlined_call_operand.vmem [shape: f32[2,1,32], index: 15, kind: input, shape index: {}]
  %s16 = inlined_call_operand.vmem [shape: f32[2,1,32], index: 16, kind: input, shape index: {}]
  %s17 = inlined_call_operand.hbm [shape: f32[2,8,32], index: 17, kind: output, shape index: {}]
  %s18 = sld [smem:[#allocation0]]
  $region101: #{tpu_custom_call.1} parent=0
    _
  %s20 = ssub.s32 1, %s18
  %s21 = scalar_select 0, %s20, %s18
  $region1: #{tpu_custom_call.1} parent=0
    #allocation2 [shape = 'u8[8192]{0}', space=vmem, size = 0x2000, scoped, tag = 'output window, operand 0']
    #allocation3 [shape = 's32[2]{0}', space=sflag, size = 0x8, scoped, tag = 'scoped memory for tpu_custom_call.1']
    %22 = vsyncpa [#allocation3], 0
    %s23 = scalar_lea.sflag [#allocation3], 1
    %24 = vsyncpa %s23, 0
    loop: start=0, step=1, limit=4
    $region2: #{tpu_custom_call.1} parent=1 // loop_pre_header
      _
    $region3: #{tpu_custom_call.1} parent=1 // loop_header
      %s26 = sphi 0, %s30
      %p27 = scmp.ge.s32.totalorder %s26, 4
      %s36 = sphi 0, %s38
      %s39 = sphi 0, %s36
      %s40 = sphi 0, %s39
      %s56 = sphi 0, %s40
      %s60 = sphi 0, %s60
      %s62 = sphi 0, %s60
      %s63 = sphi 0, %s62
      %s77 = sphi 0, %s63
      %s81 = sphi 0, %s81
      %s83 = sphi 0, %s81
      %s84 = sphi 0, %s83
      %s98 = sphi 0, %s84
      %s102 = sphi 0, %s102
      %s104 = sphi 0, %s102
      %s105 = sphi 0, %s104
      %s119 = sphi 0, %s105
      %s123 = sphi 0, %s123
      %s125 = sphi 0, %s123
      %s126 = sphi 0, %s125
      %s140 = sphi 0, %s126
      %s144 = sphi 0, %s144
      %s146 = sphi 0, %s144
      %s147 = sphi 0, %s146
      %s161 = sphi 0, %s147
      %s165 = sphi 0, %s165
      %s167 = sphi 0, %s165
      %s168 = sphi 0, %s167
      %s182 = sphi 0, %s168
      %s186 = sphi 0, %s186
      %s188 = sphi 0, %s186
      %s189 = sphi 0, %s188
      %s203 = sphi 0, %s189
      %s207 = sphi 0, %s207
      %s209 = sphi 0, %s207
      %s210 = sphi 0, %s209
      %s224 = sphi 0, %s210
      %s228 = sphi 0, %s228
      %s230 = sphi 0, %s228
      %s231 = sphi 0, %s230
      %s245 = sphi 0, %s231
      %s249 = sphi 0, %s249
      %s251 = sphi 0, %s249
      %s252 = sphi 0, %s251
      %s266 = sphi 0, %s252
      %s270 = sphi 0, %s270
      %s272 = sphi 0, %s270
      %s273 = sphi 0, %s272
      %s287 = sphi 0, %s273
      %s291 = sphi 0, %s291
      %s293 = sphi 0, %s291
      %s294 = sphi 0, %s293
      %s308 = sphi 0, %s294
      %s312 = sphi 0, %s312
      %s314 = sphi 0, %s312
      %s315 = sphi 0, %s314
      %s329 = sphi 0, %s315
      %s333 = sphi 0, %s333
      %s335 = sphi 0, %s333
      %s336 = sphi 0, %s335
      %s350 = sphi 0, %s336
      %s354 = sphi 0, %s354
      %s356 = sphi 0, %s354
      %s357 = sphi 0, %s356
      %s371 = sphi 0, %s357
      %s375 = sphi 0, %s375
      %s377 = sphi 0, %s375
      %s378 = sphi 0, %s377
      %s392 = sphi 0, %s378
      %s398 = sphi 0, %s400
      %s401 = sphi 0, %s398
      %s402 = sphi 0, %s401
      %s418 = sphi 0, %s402
    $region4: #{tpu_custom_call.1} parent=1 // loop_header_branch
      %29 = sbr.rel (%p27) target = $region8
    $region5: #{tpu_custom_call.1} parent=1 // loop_body
      %s31 = ssub.s32 %s26, 1
      %s32 = ssub.s32 %s26, 2
      %s33 = sadd.s32 %s26, 1
      %s34 = ssub.s32 %s26, %s33
      %p35 = scmp.eq.s32.totalorder %s34, 0
      %s37 = sadd.s32 %s36, 1
      %s38 = scalar_select %p35, %s36, %s37
      %p41 = pneg %p35
      %p42 = scmp.eq.s32.totalorder %s26, 1
      %p43 = por %p41, %p42
      %p44 = scmp.ne.s32.totalorder %s36, %s39
      %p45 = scmp.eq.s32.totalorder %s26, 0
      %p46 = por %p44, %p45
      %p47 = scmp.ne.s32.totalorder %s36, %s39
      %p48 = scmp.eq.s32.totalorder %s31, 1
      %p49 = por %p47, %p48
      %p50 = scmp.ne.s32.totalorder %s39, %s40
      %p51 = scmp.eq.s32.totalorder %s31, 0
      %p52 = por %p50, %p51
      %p53 = scmp.ne.s32.totalorder %s39, %s40
      %p54 = scmp.eq.s32.totalorder %s32, 1
      %p55 = por %p53, %p54
      %p57 = scmp.ne.s32.totalorder %s40, %s56
      %p58 = scmp.eq.s32.totalorder %s32, 0
      %p59 = por %p57, %p58
      %s61 = sadd.s32 %s60, 1
      %p64 = scmp.eq.s32.totalorder %s26, 1
      %p65 = scmp.ne.s32.totalorder %s60, %s62
      %p66 = scmp.eq.s32.totalorder %s26, 0
      %p67 = por %p65, %p66
      %p68 = scmp.ne.s32.totalorder %s60, %s62
      %p69 = scmp.eq.s32.totalorder %s31, 1
      %p70 = por %p68, %p69
      %p71 = scmp.ne.s32.totalorder %s62, %s63
      %p72 = scmp.eq.s32.totalorder %s31, 0
      %p73 = por %p71, %p72
      %p74 = scmp.ne.s32.totalorder %s62, %s63
      %p75 = scmp.eq.s32.totalorder %s32, 1
      %p76 = por %p74, %p75
      %p78 = scmp.ne.s32.totalorder %s63, %s77
      %p79 = scmp.eq.s32.totalorder %s32, 0
      %p80 = por %p78, %p79
      %s82 = sadd.s32 %s81, 1
      %p85 = scmp.eq.s32.totalorder %s26, 1
      %p86 = scmp.ne.s32.totalorder %s81, %s83
      %p87 = scmp.eq.s32.totalorder %s26, 0
      %p88 = por %p86, %p87
      %p89 = scmp.ne.s32.totalorder %s81, %s83
      %p90 = scmp.eq.s32.totalorder %s31, 1
      %p91 = por %p89, %p90
      %p92 = scmp.ne.s32.totalorder %s83, %s84
      %p93 = scmp.eq.s32.totalorder %s31, 0
      %p94 = por %p92, %p93
      %p95 = scmp.ne.s32.totalorder %s83, %s84
      %p96 = scmp.eq.s32.totalorder %s32, 1
      %p97 = por %p95, %p96
      %p99 = scmp.ne.s32.totalorder %s84, %s98
      %p100 = scmp.eq.s32.totalorder %s32, 0
      %p101 = por %p99, %p100
      %s103 = sadd.s32 %s102, 1
      %p106 = scmp.eq.s32.totalorder %s26, 1
      %p107 = scmp.ne.s32.totalorder %s102, %s104
      %p108 = scmp.eq.s32.totalorder %s26, 0
      %p109 = por %p107, %p108
      %p110 = scmp.ne.s32.totalorder %s102, %s104
      %p111 = scmp.eq.s32.totalorder %s31, 1
      %p112 = por %p110, %p111
      %p113 = scmp.ne.s32.totalorder %s104, %s105
      %p114 = scmp.eq.s32.totalorder %s31, 0
      %p115 = por %p113, %p114
      %p116 = scmp.ne.s32.totalorder %s104, %s105
      %p117 = scmp.eq.s32.totalorder %s32, 1
      %p118 = por %p116, %p117
      %p120 = scmp.ne.s32.totalorder %s105, %s119
      %p121 = scmp.eq.s32.totalorder %s32, 0
      %p122 = por %p120, %p121
      %s124 = sadd.s32 %s123, 1
      %p127 = scmp.eq.s32.totalorder %s26, 1
      %p128 = scmp.ne.s32.totalorder %s123, %s125
      %p129 = scmp.eq.s32.totalorder %s26, 0
      %p130 = por %p128, %p129
      %p131 = scmp.ne.s32.totalorder %s123, %s125
      %p132 = scmp.eq.s32.totalorder %s31, 1
      %p133 = por %p131, %p132
      %p134 = scmp.ne.s32.totalorder %s125, %s126
      %p135 = scmp.eq.s32.totalorder %s31, 0
      %p136 = por %p134, %p135
      %p137 = scmp.ne.s32.totalorder %s125, %s126
      %p138 = scmp.eq.s32.totalorder %s32, 1
      %p139 = por %p137, %p138
      %p141 = scmp.ne.s32.totalorder %s126, %s140
      %p142 = scmp.eq.s32.totalorder %s32, 0
      %p143 = por %p141, %p142
      %s145 = sadd.s32 %s144, 1
      %p148 = scmp.eq.s32.totalorder %s26, 1
      %p149 = scmp.ne.s32.totalorder %s144, %s146
      %p150 = scmp.eq.s32.totalorder %s26, 0
      %p151 = por %p149, %p150
      %p152 = scmp.ne.s32.totalorder %s144, %s146
      %p153 = scmp.eq.s32.totalorder %s31, 1
      %p154 = por %p152, %p153
      %p155 = scmp.ne.s32.totalorder %s146, %s147
      %p156 = scmp.eq.s32.totalorder %s31, 0
      %p157 = por %p155, %p156
      %p158 = scmp.ne.s32.totalorder %s146, %s147
      %p159 = scmp.eq.s32.totalorder %s32, 1
      %p160 = por %p158, %p159
      %p162 = scmp.ne.s32.totalorder %s147, %s161
      %p163 = scmp.eq.s32.totalorder %s32, 0
      %p164 = por %p162, %p163
      %s166 = sadd.s32 %s165, 1
      %p169 = scmp.eq.s32.totalorder %s26, 1
      %p170 = scmp.ne.s32.totalorder %s165, %s167
      %p171 = scmp.eq.s32.totalorder %s26, 0
      %p172 = por %p170, %p171
      %p173 = scmp.ne.s32.totalorder %s165, %s167
      %p174 = scmp.eq.s32.totalorder %s31, 1
      %p175 = por %p173, %p174
      %p176 = scmp.ne.s32.totalorder %s167, %s168
      %p177 = scmp.eq.s32.totalorder %s31, 0
      %p178 = por %p176, %p177
      %p179 = scmp.ne.s32.totalorder %s167, %s168
      %p180 = scmp.eq.s32.totalorder %s32, 1
      %p181 = por %p179, %p180
      %p183 = scmp.ne.s32.totalorder %s168, %s182
      %p184 = scmp.eq.s32.totalorder %s32, 0
      %p185 = por %p183, %p184
      %s187 = sadd.s32 %s186, 1
      %p190 = scmp.eq.s32.totalorder %s26, 1
      %p191 = scmp.ne.s32.totalorder %s186, %s188
      %p192 = scmp.eq.s32.totalorder %s26, 0
      %p193 = por %p191, %p192
      %p194 = scmp.ne.s32.totalorder %s186, %s188
      %p195 = scmp.eq.s32.totalorder %s31, 1
      %p196 = por %p194, %p195
      %p197 = scmp.ne.s32.totalorder %s188, %s189
      %p198 = scmp.eq.s32.totalorder %s31, 0
      %p199 = por %p197, %p198
      %p200 = scmp.ne.s32.totalorder %s188, %s189
      %p201 = scmp.eq.s32.totalorder %s32, 1
      %p202 = por %p200, %p201
      %p204 = scmp.ne.s32.totalorder %s189, %s203
      %p205 = scmp.eq.s32.totalorder %s32, 0
      %p206 = por %p204, %p205
      %s208 = sadd.s32 %s207, 1
      %p211 = scmp.eq.s32.totalorder %s26, 1
      %p212 = scmp.ne.s32.totalorder %s207, %s209
      %p213 = scmp.eq.s32.totalorder %s26, 0
      %p214 = por %p212, %p213
      %p215 = scmp.ne.s32.totalorder %s207, %s209
      %p216 = scmp.eq.s32.totalorder %s31, 1
      %p217 = por %p215, %p216
      %p218 = scmp.ne.s32.totalorder %s209, %s210
      %p219 = scmp.eq.s32.totalorder %s31, 0
      %p220 = por %p218, %p219
      %p221 = scmp.ne.s32.totalorder %s209, %s210
      %p222 = scmp.eq.s32.totalorder %s32, 1
      %p223 = por %p221, %p222
      %p225 = scmp.ne.s32.totalorder %s210, %s224
      %p226 = scmp.eq.s32.totalorder %s32, 0
      %p227 = por %p225, %p226
      %s229 = sadd.s32 %s228, 1
      %p232 = scmp.eq.s32.totalorder %s26, 1
      %p233 = scmp.ne.s32.totalorder %s228, %s230
      %p234 = scmp.eq.s32.totalorder %s26, 0
      %p235 = por %p233, %p234
      %p236 = scmp.ne.s32.totalorder %s228, %s230
      %p237 = scmp.eq.s32.totalorder %s31, 1
      %p238 = por %p236, %p237
      %p239 = scmp.ne.s32.totalorder %s230, %s231
      %p240 = scmp.eq.s32.totalorder %s31, 0
      %p241 = por %p239, %p240
      %p242 = scmp.ne.s32.totalorder %s230, %s231
      %p243 = scmp.eq.s32.totalorder %s32, 1
      %p244 = por %p242, %p243
      %p246 = scmp.ne.s32.totalorder %s231, %s245
      %p247 = scmp.eq.s32.totalorder %s32, 0
      %p248 = por %p246, %p247
      %s250 = sadd.s32 %s249, 1
      %p253 = scmp.eq.s32.totalorder %s26, 1
      %p254 = scmp.ne.s32.totalorder %s249, %s251
      %p255 = scmp.eq.s32.totalorder %s26, 0
      %p256 = por %p254, %p255
      %p257 = scmp.ne.s32.totalorder %s249, %s251
      %p258 = scmp.eq.s32.totalorder %s31, 1
      %p259 = por %p257, %p258
      %p260 = scmp.ne.s32.totalorder %s251, %s252
      %p261 = scmp.eq.s32.totalorder %s31, 0
      %p262 = por %p260, %p261
      %p263 = scmp.ne.s32.totalorder %s251, %s252
      %p264 = scmp.eq.s32.totalorder %s32, 1
      %p265 = por %p263, %p264
      %p267 = scmp.ne.s32.totalorder %s252, %s266
      %p268 = scmp.eq.s32.totalorder %s32, 0
      %p269 = por %p267, %p268
      %s271 = sadd.s32 %s270, 1
      %p274 = scmp.eq.s32.totalorder %s26, 1
      %p275 = scmp.ne.s32.totalorder %s270, %s272
      %p276 = scmp.eq.s32.totalorder %s26, 0
      %p277 = por %p275, %p276
      %p278 = scmp.ne.s32.totalorder %s270, %s272
      %p279 = scmp.eq.s32.totalorder %s31, 1
      %p280 = por %p278, %p279
      %p281 = scmp.ne.s32.totalorder %s272, %s273
      %p282 = scmp.eq.s32.totalorder %s31, 0
      %p283 = por %p281, %p282
      %p284 = scmp.ne.s32.totalorder %s272, %s273
      %p285 = scmp.eq.s32.totalorder %s32, 1
      %p286 = por %p284, %p285
      %p288 = scmp.ne.s32.totalorder %s273, %s287
      %p289 = scmp.eq.s32.totalorder %s32, 0
      %p290 = por %p288, %p289
      %s292 = sadd.s32 %s291, 1
      %p295 = scmp.eq.s32.totalorder %s26, 1
      %p296 = scmp.ne.s32.totalorder %s291, %s293
      %p297 = scmp.eq.s32.totalorder %s26, 0
      %p298 = por %p296, %p297
      %p299 = scmp.ne.s32.totalorder %s291, %s293
      %p300 = scmp.eq.s32.totalorder %s31, 1
      %p301 = por %p299, %p300
      %p302 = scmp.ne.s32.totalorder %s293, %s294
      %p303 = scmp.eq.s32.totalorder %s31, 0
      %p304 = por %p302, %p303
      %p305 = scmp.ne.s32.totalorder %s293, %s294
      %p306 = scmp.eq.s32.totalorder %s32, 1
      %p307 = por %p305, %p306
      %p309 = scmp.ne.s32.totalorder %s294, %s308
      %p310 = scmp.eq.s32.totalorder %s32, 0
      %p311 = por %p309, %p310
      %s313 = sadd.s32 %s312, 1
      %p316 = scmp.eq.s32.totalorder %s26, 1
      %p317 = scmp.ne.s32.totalorder %s312, %s314
      %p318 = scmp.eq.s32.totalorder %s26, 0
      %p319 = por %p317, %p318
      %p320 = scmp.ne.s32.totalorder %s312, %s314
      %p321 = scmp.eq.s32.totalorder %s31, 1
      %p322 = por %p320, %p321
      %p323 = scmp.ne.s32.totalorder %s314, %s315
      %p324 = scmp.eq.s32.totalorder %s31, 0
      %p325 = por %p323, %p324
      %p326 = scmp.ne.s32.totalorder %s314, %s315
      %p327 = scmp.eq.s32.totalorder %s32, 1
      %p328 = por %p326, %p327
      %p330 = scmp.ne.s32.totalorder %s315, %s329
      %p331 = scmp.eq.s32.totalorder %s32, 0
      %p332 = por %p330, %p331
      %s334 = sadd.s32 %s333, 1
      %p337 = scmp.eq.s32.totalorder %s26, 1
      %p338 = scmp.ne.s32.totalorder %s333, %s335
      %p339 = scmp.eq.s32.totalorder %s26, 0
      %p340 = por %p338, %p339
      %p341 = scmp.ne.s32.totalorder %s333, %s335
      %p342 = scmp.eq.s32.totalorder %s31, 1
      %p343 = por %p341, %p342
      %p344 = scmp.ne.s32.totalorder %s335, %s336
      %p345 = scmp.eq.s32.totalorder %s31, 0
      %p346 = por %p344, %p345
      %p347 = scmp.ne.s32.totalorder %s335, %s336
      %p348 = scmp.eq.s32.totalorder %s32, 1
      %p349 = por %p347, %p348
      %p351 = scmp.ne.s32.totalorder %s336, %s350
      %p352 = scmp.eq.s32.totalorder %s32, 0
      %p353 = por %p351, %p352
      %s355 = sadd.s32 %s354, 1
      %p358 = scmp.eq.s32.totalorder %s26, 1
      %p359 = scmp.ne.s32.totalorder %s354, %s356
      %p360 = scmp.eq.s32.totalorder %s26, 0
      %p361 = por %p359, %p360
      %p362 = scmp.ne.s32.totalorder %s354, %s356
      %p363 = scmp.eq.s32.totalorder %s31, 1
      %p364 = por %p362, %p363
      %p365 = scmp.ne.s32.totalorder %s356, %s357
      %p366 = scmp.eq.s32.totalorder %s31, 0
      %p367 = por %p365, %p366
      %p368 = scmp.ne.s32.totalorder %s356, %s357
      %p369 = scmp.eq.s32.totalorder %s32, 1
      %p370 = por %p368, %p369
      %p372 = scmp.ne.s32.totalorder %s357, %s371
      %p373 = scmp.eq.s32.totalorder %s32, 0
      %p374 = por %p372, %p373
      %s376 = sadd.s32 %s375, 1
      %p379 = scmp.eq.s32.totalorder %s26, 1
      %p380 = scmp.ne.s32.totalorder %s375, %s377
      %p381 = scmp.eq.s32.totalorder %s26, 0
      %p382 = por %p380, %p381
      %p383 = scmp.ne.s32.totalorder %s375, %s377
      %p384 = scmp.eq.s32.totalorder %s31, 1
      %p385 = por %p383, %p384
      %p386 = scmp.ne.s32.totalorder %s377, %s378
      %p387 = scmp.eq.s32.totalorder %s31, 0
      %p388 = por %p386, %p387
      %p389 = scmp.ne.s32.totalorder %s377, %s378
      %p390 = scmp.eq.s32.totalorder %s32, 1
      %p391 = por %p389, %p390
      %p393 = scmp.ne.s32.totalorder %s378, %s392
      %p394 = scmp.eq.s32.totalorder %s32, 0
      %p395 = por %p393, %p394
      %s396 = ssub.s32 %s26, %s33
      %p397 = scmp.eq.s32.totalorder %s396, 0
      %s399 = sadd.s32 %s398, 1
      %s400 = scalar_select %p397, %s398, %s399
      %p403 = pneg %p397
      %p404 = scmp.eq.s32.totalorder %s26, 1
      %p405 = por %p403, %p404
      %p406 = scmp.ne.s32.totalorder %s398, %s401
      %p407 = scmp.eq.s32.totalorder %s26, 0
      %p408 = por %p406, %p407
      %p409 = scmp.ne.s32.totalorder %s398, %s401
      %p410 = scmp.eq.s32.totalorder %s31, 1
      %p411 = por %p409, %p410
      %p412 = scmp.ne.s32.totalorder %s401, %s402
      %p413 = scmp.eq.s32.totalorder %s31, 0
      %p414 = por %p412, %p413
      %p415 = scmp.ne.s32.totalorder %s401, %s402
      %p416 = scmp.eq.s32.totalorder %s32, 1
      %p417 = por %p415, %p416
      %p419 = scmp.ne.s32.totalorder %s402, %s418
      %p420 = scmp.eq.s32.totalorder %s32, 0
      %p421 = por %p419, %p420
      %p422 = scmp.le.s32.totalorder 1, %s26
      %p423 = scmp.lt.s32.totalorder %s26, 3
      %p424 = pnand %p422, %p423
      %p425 = pneg %p424
      // Predicated region
      $region9: #{tpu_custom_call.1} parent=5 // pred_check
        _
      $region10: #{tpu_custom_call.1} parent=5 // pred_check_branch
        %427 = sbr.rel (%p424) target = $region12
      $region11: #{tpu_custom_call.1} parent=5 // pred_region
        %s428 = ssub.s32 %s26, 1
        // Predicated region
        $region13: #{tpu_custom_call.1} parent=11 // pred_check
          %p429 = pneg %p73
        $region14: #{tpu_custom_call.1} parent=11 // pred_check_branch
          %431 = sbr.rel (%p429) target = $region16
        $region15: #{tpu_custom_call.1} parent=11 // pred_region
          _
        $region16: #{tpu_custom_call.1} parent=11 // pred_fallthru
          _
        // Predicated region
        $region17: #{tpu_custom_call.1} parent=11 // pred_check
          %p432 = pneg %p94
        $region18: #{tpu_custom_call.1} parent=11 // pred_check_branch
          %434 = sbr.rel (%p432) target = $region20
        $region19: #{tpu_custom_call.1} parent=11 // pred_region
          _
        $region20: #{tpu_custom_call.1} parent=11 // pred_fallthru
          _
        // Predicated region
        $region21: #{tpu_custom_call.1} parent=11 // pred_check
          %p435 = pneg %p115
        $region22: #{tpu_custom_call.1} parent=11 // pred_check_branch
          %437 = sbr.rel (%p435) target = $region24
        $region23: #{tpu_custom_call.1} parent=11 // pred_region
          _
        $region24: #{tpu_custom_call.1} parent=11 // pred_fallthru
          _
        // Predicated region
        $region25: #{tpu_custom_call.1} parent=11 // pred_check
          %p438 = pneg %p136
        $region26: #{tpu_custom_call.1} parent=11 // pred_check_branch
          %440 = sbr.rel (%p438) target = $region28
        $region27: #{tpu_custom_call.1} parent=11 // pred_region
          _
        $region28: #{tpu_custom_call.1} parent=11 // pred_fallthru
          _
        // Predicated region
        $region29: #{tpu_custom_call.1} parent=11 // pred_check
          %p441 = pneg %p157
        $region30: #{tpu_custom_call.1} parent=11 // pred_check_branch
          %443 = sbr.rel (%p441) target = $region32
        $region31: #{tpu_custom_call.1} parent=11 // pred_region
          _
        $region32: #{tpu_custom_call.1} parent=11 // pred_fallthru
          _
        // Predicated region
        $region33: #{tpu_custom_call.1} parent=11 // pred_check
          %p444 = pneg %p178
        $region34: #{tpu_custom_call.1} parent=11 // pred_check_branch
          %446 = sbr.rel (%p444) target = $region36
        $region35: #{tpu_custom_call.1} parent=11 // pred_region
          _
        $region36: #{tpu_custom_call.1} parent=11 // pred_fallthru
          _
        // Predicated region
        $region37: #{tpu_custom_call.1} parent=11 // pred_check
          %p447 = pneg %p199
        $region38: #{tpu_custom_call.1} parent=11 // pred_check_branch
          %449 = sbr.rel (%p447) target = $region40
        $region39: #{tpu_custom_call.1} parent=11 // pred_region
          _
        $region40: #{tpu_custom_call.1} parent=11 // pred_fallthru
          _
        // Predicated region
        $region41: #{tpu_custom_call.1} parent=11 // pred_check
          %p450 = pneg %p220
        $region42: #{tpu_custom_call.1} parent=11 // pred_check_branch
          %452 = sbr.rel (%p450) target = $region44
        $region43: #{tpu_custom_call.1} parent=11 // pred_region
          _
        $region44: #{tpu_custom_call.1} parent=11 // pred_fallthru
          _
        // Predicated region
        $region45: #{tpu_custom_call.1} parent=11 // pred_check
          %p453 = pneg %p241
        $region46: #{tpu_custom_call.1} parent=11 // pred_check_branch
          %455 = sbr.rel (%p453) target = $region48
        $region47: #{tpu_custom_call.1} parent=11 // pred_region
          _
        $region48: #{tpu_custom_call.1} parent=11 // pred_fallthru
          _
        // Predicated region
        $region49: #{tpu_custom_call.1} parent=11 // pred_check
          %p456 = pneg %p262
        $region50: #{tpu_custom_call.1} parent=11 // pred_check_branch
          %458 = sbr.rel (%p456) target = $region52
        $region51: #{tpu_custom_call.1} parent=11 // pred_region
          _
        $region52: #{tpu_custom_call.1} parent=11 // pred_fallthru
          _
        // Predicated region
        $region53: #{tpu_custom_call.1} parent=11 // pred_check
          %p459 = pneg %p283
        $region54: #{tpu_custom_call.1} parent=11 // pred_check_branch
          %461 = sbr.rel (%p459) target = $region56
        $region55: #{tpu_custom_call.1} parent=11 // pred_region
          _
        $region56: #{tpu_custom_call.1} parent=11 // pred_fallthru
          _
        // Predicated region
        $region57: #{tpu_custom_call.1} parent=11 // pred_check
          %p462 = pneg %p304
        $region58: #{tpu_custom_call.1} parent=11 // pred_check_branch
          %464 = sbr.rel (%p462) target = $region60
        $region59: #{tpu_custom_call.1} parent=11 // pred_region
          _
        $region60: #{tpu_custom_call.1} parent=11 // pred_fallthru
          _
        // Predicated region
        $region61: #{tpu_custom_call.1} parent=11 // pred_check
          %p465 = pneg %p325
        $region62: #{tpu_custom_call.1} parent=11 // pred_check_branch
          %467 = sbr.rel (%p465) target = $region64
        $region63: #{tpu_custom_call.1} parent=11 // pred_region
          _
        $region64: #{tpu_custom_call.1} parent=11 // pred_fallthru
          _
        // Predicated region
        $region65: #{tpu_custom_call.1} parent=11 // pred_check
          %p468 = pneg %p346
        $region66: #{tpu_custom_call.1} parent=11 // pred_check_branch
          %470 = sbr.rel (%p468) target = $region68
        $region67: #{tpu_custom_call.1} parent=11 // pred_region
          _
        $region68: #{tpu_custom_call.1} parent=11 // pred_fallthru
          _
        // Predicated region
        $region69: #{tpu_custom_call.1} parent=11 // pred_check
          %p471 = pneg %p367
        $region70: #{tpu_custom_call.1} parent=11 // pred_check_branch
          %473 = sbr.rel (%p471) target = $region72
        $region71: #{tpu_custom_call.1} parent=11 // pred_region
          _
        $region72: #{tpu_custom_call.1} parent=11 // pred_fallthru
          _
        // Predicated region
        $region73: #{tpu_custom_call.1} parent=11 // pred_check
          %p474 = pneg %p388
        $region74: #{tpu_custom_call.1} parent=11 // pred_check_branch
          %476 = sbr.rel (%p474) target = $region76
        $region75: #{tpu_custom_call.1} parent=11 // pred_region
          _
        $region76: #{tpu_custom_call.1} parent=11 // pred_fallthru
          _
      $region12: #{tpu_custom_call.1} parent=5 // pred_fallthru
        _
      %p477 = scmp.lt.s32.totalorder %s26, 2
      // Predicated region
      $region77: #{tpu_custom_call.1} parent=5 // pred_check
        %p478 = pneg %p477
      $region78: #{tpu_custom_call.1} parent=5 // pred_check_branch
        %480 = sbr.rel (%p478) target = $region80
      $region79: #{tpu_custom_call.1} parent=5 // pred_region
        // Predicated region
        $region81: #{tpu_custom_call.1} parent=79 // pred_check
          %p481 = pneg %p46
        $region82: #{tpu_custom_call.1} parent=79 // pred_check_branch
          %483 = sbr.rel (%p481) target = $region84
        $region83: #{tpu_custom_call.1} parent=79 // pred_region
          %p484 = scmp.lt.s32.totalorder %s26, 1
          %s485 = scalar_select %p484, %s26, 1
          %s486 = smul.addr %s485, 8
          %s487 = scalar_lea.vmem %s0, %s486
        $region84: #{tpu_custom_call.1} parent=79 // pred_fallthru
          _
      $region80: #{tpu_custom_call.1} parent=5 // pred_fallthru
        _
      %p488 = scmp.le.s32.totalorder 1, %s26
      %p489 = scmp.lt.s32.totalorder %s26, 3
      %p490 = pnand %p488, %p489
      %p491 = pneg %p490
      // Predicated region
      $region85: #{tpu_custom_call.1} parent=5 // pred_check
        _
      $region86: #{tpu_custom_call.1} parent=5 // pred_check_branch
        %493 = sbr.rel (%p490) target = $region88
      $region87: #{tpu_custom_call.1} parent=5 // pred_region
        %s494 = ssub.s32 %s26, 1
        %p495 = scmp.lt.s32.totalorder %s31, 1
        %s496 = scalar_select %p495, %s31, 1
        %s497 = smul.addr %s496, 8
        %s498 = scalar_lea.vmem %s0, %s497
        %p499 = pneg %p52
        %p500 = pneg %p49
        %p501 = pneg %p73
        %p502 = pneg %p70
        %p503 = pneg %p94
        %p504 = pneg %p91
        %p505 = pneg %p115
        %p506 = pneg %p112
        %p507 = pneg %p136
        %p508 = pneg %p133
        %p509 = pneg %p157
        %p510 = pneg %p154
        %p511 = pneg %p178
        %p512 = pneg %p175
        %p513 = pneg %p199
        %p514 = pneg %p196
        %p515 = pneg %p220
        %p516 = pneg %p217
        %p517 = pneg %p241
        %p518 = pneg %p238
        %p519 = pneg %p262
        %p520 = pneg %p259
        %p521 = pneg %p283
        %p522 = pneg %p280
        %p523 = pneg %p304
        %p524 = pneg %p301
        %p525 = pneg %p325
        %p526 = pneg %p322
        %p527 = pneg %p346
        %p528 = pneg %p343
        %p529 = pneg %p367
        %p530 = pneg %p364
        %p531 = pneg %p388
        %p532 = pneg %p385
        %p533 = pneg %p414
        %p534 = pneg %p411
        %s535 = sand.u32 %s401, 1
        %s536 = scalar_lea.sflag [#allocation3], %s535
        %s537 = sand.u32 %s401, 1
        %s538 = smul.addr %s537, 8
        %s539 = scalar_lea.vmem [#allocation2], %s538
        %p540 = scmp.lt.s32.totalorder %s31, 1
        %s541 = scalar_select %p540, %s31, 1
        %s542 = smul.addr %s541, 8
        %s543 = scalar_lea.vmem %s0, %s542
        %v544 = vld [vmem:[%s543] sm:$0xff]
        %v545 = vld [vmem:[%s1] sm:$0xff]
        %v546 = vld [vmem:[%s1 + $0x8] sm:$0xff]
        %v547 = vld [vmem:[%s1 + $0x10] sm:$0xff]
        %v548 = vld [vmem:[%s1 + $0x18] sm:$0xff]
        %v549 = vld [vmem:[%s1 + $0x20] sm:$0xff]
        %v550 = vld [vmem:[%s1 + $0x28] sm:$0xff]
        %v551 = vld [vmem:[%s1 + $0x30] sm:$0xff]
        %v552 = vld [vmem:[%s1 + $0x38] sm:$0xff]
        %v553 = vld [vmem:[%s1 + $0x40] sm:$0xff]
        %v554 = vld [vmem:[%s1 + $0x48] sm:$0xff]
        %v555 = vld [vmem:[%s1 + $0x50] sm:$0xff]
        %v556 = vld [vmem:[%s1 + $0x58] sm:$0xff]
        %v557 = vld [vmem:[%s1 + $0x60] sm:$0xff]
        %v558 = vld [vmem:[%s1 + $0x68] sm:$0xff]
        %v559 = vld [vmem:[%s1 + $0x70] sm:$0xff]
        %v560 = vld [vmem:[%s1 + $0x78] sm:$0xff]
        %v561 = vld [vmem:[%s4] sm:$0x1]
        %v562 = vld [vmem:[%s4 + $0x1] sm:$0x1]
        %v563 = vld [vmem:[%s4 + $0x2] sm:$0x1]
        %v564 = vld [vmem:[%s4 + $0x3] sm:$0x1]
        %v569 = vperm.slane %v561, 0
        %v570 = vperm.slane %v562, 0
        %v571 = vperm.slane %v563, 0
        %v572 = vperm.slane %v564, 0
        %vm577 = vcmask 261120
        %v579 = vsel %vm577, %v544, 0
        %581 = vmatpush.msra.mxu0 0.0
        %582 = vmatpush.msra.mxu0 0.0
        %583 = vmatpush.msra.mxu0 0.0
        %584 = vmatpush.msra.mxu0 0.0
        %585 = vmatpush.msra.mxu0 0.0
        %586 = vmatpush.msra.mxu0 0.0
        %587 = vmatpush.msra.mxu0 0.0
        %588 = vmatpush.msra.mxu0 0.0
        %589 = vmatpush.msra.mxu0 0.0
        %590 = vmatpush.msra.mxu0 0.0
        %591 = vmatpush.msra.mxu0 0.0
        %592 = vmatpush.msra.mxu0 0.0
        %593 = vmatpush.msra.mxu0 %v548
        %594 = vmatpush.msra.mxu0 %v547
        %595 = vmatpush.msra.mxu0 %v546
        %596 = vmatpush.msra.mxu0 %v545
        %597 = vmatmul.f32.gmra.mxu0 %v579
        %v598 = vpop.f32.mrf.mxu0
        %v599 = vadd.f32 %v569, %v598
        %600 = vdwg.mxu0
        %601 = vmatpush.msra.mxu0 0.0
        %602 = vmatpush.msra.mxu0 0.0
        %603 = vmatpush.msra.mxu0 0.0
        %604 = vmatpush.msra.mxu0 0.0
        %605 = vmatpush.msra.mxu0 0.0
        %606 = vmatpush.msra.mxu0 0.0
        %607 = vmatpush.msra.mxu0 0.0
        %608 = vmatpush.msra.mxu0 0.0
        %609 = vmatpush.msra.mxu0 0.0
        %610 = vmatpush.msra.mxu0 0.0
        %611 = vmatpush.msra.mxu0 0.0
        %612 = vmatpush.msra.mxu0 0.0
        %613 = vmatpush.msra.mxu0 %v552
        %614 = vmatpush.msra.mxu0 %v551
        %615 = vmatpush.msra.mxu0 %v550
        %616 = vmatpush.msra.mxu0 %v549
        %617 = vmatmul.f32.gmra.mxu0 %v579
        %v618 = vpop.f32.mrf.mxu0
        %v619 = vadd.f32 %v570, %v618
        %620 = vdwg.mxu0
        %621 = vmatpush.msra.mxu0 0.0
        %622 = vmatpush.msra.mxu0 0.0
        %623 = vmatpush.msra.mxu0 0.0
        %624 = vmatpush.msra.mxu0 0.0
        %625 = vmatpush.msra.mxu0 0.0
        %626 = vmatpush.msra.mxu0 0.0
        %627 = vmatpush.msra.mxu0 0.0
        %628 = vmatpush.msra.mxu0 0.0
        %629 = vmatpush.msra.mxu0 0.0
        %630 = vmatpush.msra.mxu0 0.0
        %631 = vmatpush.msra.mxu0 0.0
        %632 = vmatpush.msra.mxu0 0.0
        %633 = vmatpush.msra.mxu0 %v556
        %634 = vmatpush.msra.mxu0 %v555
        %635 = vmatpush.msra.mxu0 %v554
        %636 = vmatpush.msra.mxu0 %v553
        %637 = vmatmul.f32.gmra.mxu0 %v579
        %v638 = vpop.f32.mrf.mxu0
        %v639 = vadd.f32 %v571, %v638
        %640 = vdwg.mxu0
        %641 = vmatpush.msra.mxu0 0.0
        %642 = vmatpush.msra.mxu0 0.0
        %643 = vmatpush.msra.mxu0 0.0
        %644 = vmatpush.msra.mxu0 0.0
        %645 = vmatpush.msra.mxu0 0.0
        %646 = vmatpush.msra.mxu0 0.0
        %647 = vmatpush.msra.mxu0 0.0
        %648 = vmatpush.msra.mxu0 0.0
        %649 = vmatpush.msra.mxu0 0.0
        %650 = vmatpush.msra.mxu0 0.0
        %651 = vmatpush.msra.mxu0 0.0
        %652 = vmatpush.msra.mxu0 0.0
        %653 = vmatpush.msra.mxu0 %v560
        %654 = vmatpush.msra.mxu0 %v559
        %655 = vmatpush.msra.mxu0 %v558
        %656 = vmatpush.msra.mxu0 %v557
        %657 = vmatmul.f32.gmra.mxu0 %v579
        %v658 = vpop.f32.mrf.mxu0
        %v659 = vadd.f32 %v572, %v658
        %660 = vdwg.mxu0
        %v661 = vld [vmem:[%s2] sm:$0xff]
        %v662 = vld [vmem:[%s2 + $0x8] sm:$0xff]
        %v663 = vld [vmem:[%s2 + $0x10] sm:$0xff]
        %v664 = vld [vmem:[%s2 + $0x18] sm:$0xff]
        %v665 = vld [vmem:[%s2 + $0x20] sm:$0xff]
        %v666 = vld [vmem:[%s2 + $0x28] sm:$0xff]
        %v667 = vld [vmem:[%s2 + $0x30] sm:$0xff]
        %v668 = vld [vmem:[%s2 + $0x38] sm:$0xff]
        %v669 = vld [vmem:[%s2 + $0x40] sm:$0xff]
        %v670 = vld [vmem:[%s2 + $0x48] sm:$0xff]
        %v671 = vld [vmem:[%s2 + $0x50] sm:$0xff]
        %v672 = vld [vmem:[%s2 + $0x58] sm:$0xff]
        %v673 = vld [vmem:[%s2 + $0x60] sm:$0xff]
        %v674 = vld [vmem:[%s2 + $0x68] sm:$0xff]
        %v675 = vld [vmem:[%s2 + $0x70] sm:$0xff]
        %v676 = vld [vmem:[%s2 + $0x78] sm:$0xff]
        %v677 = vld [vmem:[%s5] sm:$0x1]
        %v678 = vld [vmem:[%s5 + $0x1] sm:$0x1]
        %v679 = vld [vmem:[%s5 + $0x2] sm:$0x1]
        %v680 = vld [vmem:[%s5 + $0x3] sm:$0x1]
        %v685 = vperm.slane %v677, 0
        %v686 = vperm.slane %v678, 0
        %v687 = vperm.slane %v679, 0
        %v688 = vperm.slane %v680, 0
        %693 = vmatpush.msra.mxu0 0.0
        %694 = vmatpush.msra.mxu0 0.0
        %695 = vmatpush.msra.mxu0 0.0
        %696 = vmatpush.msra.mxu0 0.0
        %697 = vmatpush.msra.mxu0 0.0
        %698 = vmatpush.msra.mxu0 0.0
        %699 = vmatpush.msra.mxu0 0.0
        %700 = vmatpush.msra.mxu0 0.0
        %701 = vmatpush.msra.mxu0 0.0
        %702 = vmatpush.msra.mxu0 0.0
        %703 = vmatpush.msra.mxu0 0.0
        %704 = vmatpush.msra.mxu0 0.0
        %705 = vmatpush.msra.mxu0 %v664
        %706 = vmatpush.msra.mxu0 %v663
        %707 = vmatpush.msra.mxu0 %v662
        %708 = vmatpush.msra.mxu0 %v661
        %709 = vmatmul.f32.gmra.mxu0 %v579
        %v710 = vpop.f32.mrf.mxu0
        %v711 = vadd.f32 %v685, %v710
        %712 = vdwg.mxu0
        %713 = vmatpush.msra.mxu0 0.0
        %714 = vmatpush.msra.mxu0 0.0
        %715 = vmatpush.msra.mxu0 0.0
        %716 = vmatpush.msra.mxu0 0.0
        %717 = vmatpush.msra.mxu0 0.0
        %718 = vmatpush.msra.mxu0 0.0
        %719 = vmatpush.msra.mxu0 0.0
        %720 = vmatpush.msra.mxu0 0.0
        %721 = vmatpush.msra.mxu0 0.0
        %722 = vmatpush.msra.mxu0 0.0
        %723 = vmatpush.msra.mxu0 0.0
        %724 = vmatpush.msra.mxu0 0.0
        %725 = vmatpush.msra.mxu0 %v668
        %726 = vmatpush.msra.mxu0 %v667
        %727 = vmatpush.msra.mxu0 %v666
        %728 = vmatpush.msra.mxu0 %v665
        %729 = vmatmul.f32.gmra.mxu0 %v579
        %v730 = vpop.f32.mrf.mxu0
        %v731 = vadd.f32 %v686, %v730
        %732 = vdwg.mxu0
        %733 = vmatpush.msra.mxu0 0.0
        %734 = vmatpush.msra.mxu0 0.0
        %735 = vmatpush.msra.mxu0 0.0
        %736 = vmatpush.msra.mxu0 0.0
        %737 = vmatpush.msra.mxu0 0.0
        %738 = vmatpush.msra.mxu0 0.0
        %739 = vmatpush.msra.mxu0 0.0
        %740 = vmatpush.msra.mxu0 0.0
        %741 = vmatpush.msra.mxu0 0.0
        %742 = vmatpush.msra.mxu0 0.0
        %743 = vmatpush.msra.mxu0 0.0
        %744 = vmatpush.msra.mxu0 0.0
        %745 = vmatpush.msra.mxu0 %v672
        %746 = vmatpush.msra.mxu0 %v671
        %747 = vmatpush.msra.mxu0 %v670
        %748 = vmatpush.msra.mxu0 %v669
        %749 = vmatmul.f32.gmra.mxu0 %v579
        %v750 = vpop.f32.mrf.mxu0
        %v751 = vadd.f32 %v687, %v750
        %752 = vdwg.mxu0
        %753 = vmatpush.msra.mxu0 0.0
        %754 = vmatpush.msra.mxu0 0.0
        %755 = vmatpush.msra.mxu0 0.0
        %756 = vmatpush.msra.mxu0 0.0
        %757 = vmatpush.msra.mxu0 0.0
        %758 = vmatpush.msra.mxu0 0.0
        %759 = vmatpush.msra.mxu0 0.0
        %760 = vmatpush.msra.mxu0 0.0
        %761 = vmatpush.msra.mxu0 0.0
        %762 = vmatpush.msra.mxu0 0.0
        %763 = vmatpush.msra.mxu0 0.0
        %764 = vmatpush.msra.mxu0 0.0
        %765 = vmatpush.msra.mxu0 %v676
        %766 = vmatpush.msra.mxu0 %v675
        %767 = vmatpush.msra.mxu0 %v674
        %768 = vmatpush.msra.mxu0 %v673
        %769 = vmatmul.f32.gmra.mxu0 %v579
        %v770 = vpop.f32.mrf.mxu0
        %v771 = vadd.f32 %v688, %v770
        %772 = vdwg.mxu0
        %v773 = vld [vmem:[%s3] sm:$0xff]
        %v774 = vld [vmem:[%s3 + $0x8] sm:$0xff]
        %v775 = vld [vmem:[%s3 + $0x10] sm:$0xff]
        %v776 = vld [vmem:[%s3 + $0x18] sm:$0xff]
        %v777 = vld [vmem:[%s3 + $0x20] sm:$0xff]
        %v778 = vld [vmem:[%s3 + $0x28] sm:$0xff]
        %v779 = vld [vmem:[%s3 + $0x30] sm:$0xff]
        %v780 = vld [vmem:[%s3 + $0x38] sm:$0xff]
        %v781 = vld [vmem:[%s3 + $0x40] sm:$0xff]
        %v782 = vld [vmem:[%s3 + $0x48] sm:$0xff]
        %v783 = vld [vmem:[%s3 + $0x50] sm:$0xff]
        %v784 = vld [vmem:[%s3 + $0x58] sm:$0xff]
        %v785 = vld [vmem:[%s3 + $0x60] sm:$0xff]
        %v786 = vld [vmem:[%s3 + $0x68] sm:$0xff]
        %v787 = vld [vmem:[%s3 + $0x70] sm:$0xff]
        %v788 = vld [vmem:[%s3 + $0x78] sm:$0xff]
        %v789 = vld [vmem:[%s6] sm:$0x1]
        %v790 = vld [vmem:[%s6 + $0x1] sm:$0x1]
        %v791 = vld [vmem:[%s6 + $0x2] sm:$0x1]
        %v792 = vld [vmem:[%s6 + $0x3] sm:$0x1]
        %v797 = vperm.slane %v789, 0
        %v798 = vperm.slane %v790, 0
        %v799 = vperm.slane %v791, 0
        %v800 = vperm.slane %v792, 0
        %805 = vmatpush.msra.mxu0 0.0
        %806 = vmatpush.msra.mxu0 0.0
        %807 = vmatpush.msra.mxu0 0.0
        %808 = vmatpush.msra.mxu0 0.0
        %809 = vmatpush.msra.mxu0 0.0
        %810 = vmatpush.msra.mxu0 0.0
        %811 = vmatpush.msra.mxu0 0.0
        %812 = vmatpush.msra.mxu0 0.0
        %813 = vmatpush.msra.mxu0 0.0
        %814 = vmatpush.msra.mxu0 0.0
        %815 = vmatpush.msra.mxu0 0.0
        %816 = vmatpush.msra.mxu0 0.0
        %817 = vmatpush.msra.mxu0 %v776
        %818 = vmatpush.msra.mxu0 %v775
        %819 = vmatpush.msra.mxu0 %v774
        %820 = vmatpush.msra.mxu0 %v773
        %821 = vmatmul.f32.gmra.mxu0 %v579
        %v822 = vpop.f32.mrf.mxu0
        %v823 = vadd.f32 %v797, %v822
        %824 = vdwg.mxu0
        %825 = vmatpush.msra.mxu0 0.0
        %826 = vmatpush.msra.mxu0 0.0
        %827 = vmatpush.msra.mxu0 0.0
        %828 = vmatpush.msra.mxu0 0.0
        %829 = vmatpush.msra.mxu0 0.0
        %830 = vmatpush.msra.mxu0 0.0
        %831 = vmatpush.msra.mxu0 0.0
        %832 = vmatpush.msra.mxu0 0.0
        %833 = vmatpush.msra.mxu0 0.0
        %834 = vmatpush.msra.mxu0 0.0
        %835 = vmatpush.msra.mxu0 0.0
        %836 = vmatpush.msra.mxu0 0.0
        %837 = vmatpush.msra.mxu0 %v780
        %838 = vmatpush.msra.mxu0 %v779
        %839 = vmatpush.msra.mxu0 %v778
        %840 = vmatpush.msra.mxu0 %v777
        %841 = vmatmul.f32.gmra.mxu0 %v579
        %v842 = vpop.f32.mrf.mxu0
        %v843 = vadd.f32 %v798, %v842
        %844 = vdwg.mxu0
        %845 = vmatpush.msra.mxu0 0.0
        %846 = vmatpush.msra.mxu0 0.0
        %847 = vmatpush.msra.mxu0 0.0
        %848 = vmatpush.msra.mxu0 0.0
        %849 = vmatpush.msra.mxu0 0.0
        %850 = vmatpush.msra.mxu0 0.0
        %851 = vmatpush.msra.mxu0 0.0
        %852 = vmatpush.msra.mxu0 0.0
        %853 = vmatpush.msra.mxu0 0.0
        %854 = vmatpush.msra.mxu0 0.0
        %855 = vmatpush.msra.mxu0 0.0
        %856 = vmatpush.msra.mxu0 0.0
        %857 = vmatpush.msra.mxu0 %v784
        %858 = vmatpush.msra.mxu0 %v783
        %859 = vmatpush.msra.mxu0 %v782
        %860 = vmatpush.msra.mxu0 %v781
        %861 = vmatmul.f32.gmra.mxu0 %v579
        %v862 = vpop.f32.mrf.mxu0
        %v863 = vadd.f32 %v799, %v862
        %864 = vdwg.mxu0
        %865 = vmatpush.msra.mxu0 0.0
        %866 = vmatpush.msra.mxu0 0.0
        %867 = vmatpush.msra.mxu0 0.0
        %868 = vmatpush.msra.mxu0 0.0
        %869 = vmatpush.msra.mxu0 0.0
        %870 = vmatpush.msra.mxu0 0.0
        %871 = vmatpush.msra.mxu0 0.0
        %872 = vmatpush.msra.mxu0 0.0
        %873 = vmatpush.msra.mxu0 0.0
        %874 = vmatpush.msra.mxu0 0.0
        %875 = vmatpush.msra.mxu0 0.0
        %876 = vmatpush.msra.mxu0 0.0
        %877 = vmatpush.msra.mxu0 %v788
        %878 = vmatpush.msra.mxu0 %v787
        %879 = vmatpush.msra.mxu0 %v786
        %880 = vmatpush.msra.mxu0 %v785
        %881 = vmatmul.f32.gmra.mxu0 %v579
        %v882 = vpop.f32.mrf.mxu0
        %v883 = vadd.f32 %v800, %v882
        %884 = vdwg.mxu0
        %vm885 = vcmask 64512
        %v887 = vsel %vm885, %v599, 0
        %v890 = vsel %vm885, %v711, 0
        %892 = vmatpush.xpose.msra.mxu0 0.0
        %893 = vmatpush.xpose.msra.mxu0 0.0
        %894 = vmatpush.xpose.msra.mxu0 0.0
        %895 = vmatpush.xpose.msra.mxu0 0.0
        %896 = vmatpush.xpose.msra.mxu0 0.0
        %897 = vmatpush.xpose.msra.mxu0 0.0
        %898 = vmatpush.xpose.msra.mxu0 0.0
        %899 = vmatpush.xpose.msra.mxu0 0.0
        %900 = vmatpush.xpose.msra.mxu0 0.0
        %901 = vmatpush.xpose.msra.mxu0 0.0
        %902 = vmatpush.xpose.msra.mxu0 0.0
        %903 = vmatpush.xpose.msra.mxu0 0.0
        %904 = vmatpush.xpose.msra.mxu0 0.0
        %905 = vmatpush.xpose.msra.mxu0 0.0
        %906 = vmatpush.xpose.msra.mxu0 0.0
        %907 = vmatpush.xpose.msra.mxu0 %v890
        %908 = vmatmul.f32.gmra.mxu0 %v887
        %v909 = vpop.f32.mrf.mxu0
        %v910 = vadd.f32 0.0, %v909
        %911 = vdwg.mxu0
        %v913 = vsel %vm885, %v619, 0
        %v916 = vsel %vm885, %v731, 0
        %918 = vmatpush.xpose.msra.mxu0 0.0
        %919 = vmatpush.xpose.msra.mxu0 0.0
        %920 = vmatpush.xpose.msra.mxu0 0.0
        %921 = vmatpush.xpose.msra.mxu0 0.0
        %922 = vmatpush.xpose.msra.mxu0 0.0
        %923 = vmatpush.xpose.msra.mxu0 0.0
        %924 = vmatpush.xpose.msra.mxu0 0.0
        %925 = vmatpush.xpose.msra.mxu0 0.0
        %926 = vmatpush.xpose.msra.mxu0 0.0
        %927 = vmatpush.xpose.msra.mxu0 0.0
        %928 = vmatpush.xpose.msra.mxu0 0.0
        %929 = vmatpush.xpose.msra.mxu0 0.0
        %930 = vmatpush.xpose.msra.mxu0 0.0
        %931 = vmatpush.xpose.msra.mxu0 0.0
        %932 = vmatpush.xpose.msra.mxu0 0.0
        %933 = vmatpush.xpose.msra.mxu0 %v916
        %934 = vmatmul.f32.gmra.mxu0 %v913
        %v935 = vpop.f32.mrf.mxu0
        %v936 = vadd.f32 0.0, %v935
        %937 = vdwg.mxu0
        %v939 = vsel %vm885, %v639, 0
        %v942 = vsel %vm885, %v751, 0
        %944 = vmatpush.xpose.msra.mxu0 0.0
        %945 = vmatpush.xpose.msra.mxu0 0.0
        %946 = vmatpush.xpose.msra.mxu0 0.0
        %947 = vmatpush.xpose.msra.mxu0 0.0
        %948 = vmatpush.xpose.msra.mxu0 0.0
        %949 = vmatpush.xpose.msra.mxu0 0.0
        %950 = vmatpush.xpose.msra.mxu0 0.0
        %951 = vmatpush.xpose.msra.mxu0 0.0
        %952 = vmatpush.xpose.msra.mxu0 0.0
        %953 = vmatpush.xpose.msra.mxu0 0.0
        %954 = vmatpush.xpose.msra.mxu0 0.0
        %955 = vmatpush.xpose.msra.mxu0 0.0
        %956 = vmatpush.xpose.msra.mxu0 0.0
        %957 = vmatpush.xpose.msra.mxu0 0.0
        %958 = vmatpush.xpose.msra.mxu0 0.0
        %959 = vmatpush.xpose.msra.mxu0 %v942
        %960 = vmatmul.f32.gmra.mxu0 %v939
        %v961 = vpop.f32.mrf.mxu0
        %v962 = vadd.f32 0.0, %v961
        %963 = vdwg.mxu0
        %v965 = vsel %vm885, %v659, 0
        %v968 = vsel %vm885, %v771, 0
        %970 = vmatpush.xpose.msra.mxu0 0.0
        %971 = vmatpush.xpose.msra.mxu0 0.0
        %972 = vmatpush.xpose.msra.mxu0 0.0
        %973 = vmatpush.xpose.msra.mxu0 0.0
        %974 = vmatpush.xpose.msra.mxu0 0.0
        %975 = vmatpush.xpose.msra.mxu0 0.0
        %976 = vmatpush.xpose.msra.mxu0 0.0
        %977 = vmatpush.xpose.msra.mxu0 0.0
        %978 = vmatpush.xpose.msra.mxu0 0.0
        %979 = vmatpush.xpose.msra.mxu0 0.0
        %980 = vmatpush.xpose.msra.mxu0 0.0
        %981 = vmatpush.xpose.msra.mxu0 0.0
        %982 = vmatpush.xpose.msra.mxu0 0.0
        %983 = vmatpush.xpose.msra.mxu0 0.0
        %984 = vmatpush.xpose.msra.mxu0 0.0
        %985 = vmatpush.xpose.msra.mxu0 %v968
        %986 = vmatmul.f32.gmra.mxu0 %v965
        %v987 = vpop.f32.mrf.mxu0
        %v988 = vadd.f32 0.0, %v987
        %989 = vdwg.mxu0
        %v990 = vmul.f32 %v910, 0.35355338
        %v991 = vmul.f32 %v936, 0.35355338
        %v992 = vmul.f32 %v962, 0.35355338
        %v993 = vmul.f32 %v988, 0.35355338
        %v994 = vsel %vm885, %v990, -inf
        %995 = vmax.xlane.f32.xlu0 %v994
        %v996 = vpop.xlane.xlu0 %995
        %v997 = vsel %vm885, %v991, -inf
        %998 = vmax.xlane.f32.xlu0 %v997
        %v999 = vpop.xlane.xlu0 %998
        %v1000 = vsel %vm885, %v992, -inf
        %1001 = vmax.xlane.f32.xlu0 %v1000
        %v1002 = vpop.xlane.xlu0 %1001
        %v1003 = vsel %vm885, %v993, -inf
        %1004 = vmax.xlane.f32.xlu0 %v1003
        %v1005 = vpop.xlane.xlu0 %1004
        %v1006 = vsub.f32 %v990, %v996
        %v1007 = vsub.f32 %v991, %v999
        %v1008 = vsub.f32 %v992, %v1002
        %v1009 = vsub.f32 %v993, %v1005
        %v1010 = vmul.f32 %v1006, 1.442695
        %v1011 = vpow.pop %v1010
        %v1012 = vmul.f32 %v1007, 1.442695
        %v1013 = vpow.pop %v1012
        %v1014 = vmul.f32 %v1008, 1.442695
        %v1015 = vpow.pop %v1014
        %v1016 = vmul.f32 %v1009, 1.442695
        %v1017 = vpow.pop %v1016
        %v1018 = vsel %vm885, %v1011, 0.0
        %1019 = vadd.xlane.f32.xlu0 %v1018
        %v1020 = vpop.xlane.xlu0 %1019
        %v1021 = vsel %vm885, %v1013, 0.0
        %1022 = vadd.xlane.f32.xlu0 %v1021
        %v1023 = vpop.xlane.xlu0 %1022
        %v1024 = vsel %vm885, %v1015, 0.0
        %1025 = vadd.xlane.f32.xlu0 %v1024
        %v1026 = vpop.xlane.xlu0 %1025
        %v1027 = vsel %vm885, %v1017, 0.0
        %1028 = vadd.xlane.f32.xlu0 %v1027
        %v1029 = vpop.xlane.xlu0 %1028
        %v1030 = vrcp.pop %v1020
        %v1031 = vrcp.pop %v1023
        %v1032 = vrcp.pop %v1026
        %v1033 = vrcp.pop %v1029
        %v1034 = vmul.f32 %v1020, %v1030
        %v1035 = vmul.f32 %v1023, %v1031
        %v1036 = vmul.f32 %v1026, %v1032
        %v1037 = vmul.f32 %v1029, %v1033
        %v1038 = vsub.f32 2.0, %v1034
        %v1039 = vsub.f32 2.0, %v1035
        %v1040 = vsub.f32 2.0, %v1036
        %v1041 = vsub.f32 2.0, %v1037
        %v1042 = vmul.f32 %v1030, %v1038
        %v1043 = vmul.f32 %v1031, %v1039
        %v1044 = vmul.f32 %v1032, %v1040
        %v1045 = vmul.f32 %v1033, %v1041
        %v1046 = vmul.f32 %v1011, %v1042
        %v1047 = vmul.f32 %v1013, %v1043
        %v1048 = vmul.f32 %v1015, %v1044
        %v1049 = vmul.f32 %v1017, %v1045
        %v1051 = vsel %vm885, %v1046, 0
        %1053 = vmatpush.msra.mxu0 0.0
        %1054 = vmatpush.msra.mxu0 0.0
        %1055 = vmatpush.msra.mxu0 0.0
        %1056 = vmatpush.msra.mxu0 0.0
        %1057 = vmatpush.msra.mxu0 0.0
        %1058 = vmatpush.msra.mxu0 0.0
        %1059 = vmatpush.msra.mxu0 0.0
        %1060 = vmatpush.msra.mxu0 0.0
        %1061 = vmatpush.msra.mxu0 0.0
        %1062 = vmatpush.msra.mxu0 0.0
        %1063 = vmatpush.msra.mxu0 0.0
        %1064 = vmatpush.msra.mxu0 0.0
        %1065 = vmatpush.msra.mxu0 0.0
        %1066 = vmatpush.msra.mxu0 0.0
        %1067 = vmatpush.msra.mxu0 0.0
        %1068 = vmatpush.msra.mxu0 %v823
        %1069 = vmatmul.f32.gmra.mxu0 %v1051
        %v1070 = vpop.f32.mrf.mxu0
        %v1071 = vadd.f32 0.0, %v1070
        %1072 = vdwg.mxu0
        %v1074 = vsel %vm885, %v1047, 0
        %1076 = vmatpush.msra.mxu0 0.0
        %1077 = vmatpush.msra.mxu0 0.0
        %1078 = vmatpush.msra.mxu0 0.0
        %1079 = vmatpush.msra.mxu0 0.0
        %1080 = vmatpush.msra.mxu0 0.0
        %1081 = vmatpush.msra.mxu0 0.0
        %1082 = vmatpush.msra.mxu0 0.0
        %1083 = vmatpush.msra.mxu0 0.0
        %1084 = vmatpush.msra.mxu0 0.0
        %1085 = vmatpush.msra.mxu0 0.0
        %1086 = vmatpush.msra.mxu0 0.0
        %1087 = vmatpush.msra.mxu0 0.0
        %1088 = vmatpush.msra.mxu0 0.0
        %1089 = vmatpush.msra.mxu0 0.0
        %1090 = vmatpush.msra.mxu0 0.0
        %1091 = vmatpush.msra.mxu0 %v843
        %1092 = vmatmul.f32.gmra.mxu0 %v1074
        %v1093 = vpop.f32.mrf.mxu0
        %v1094 = vadd.f32 0.0, %v1093
        %1095 = vdwg.mxu0
        %v1097 = vsel %vm885, %v1048, 0
        %1099 = vmatpush.msra.mxu0 0.0
        %1100 = vmatpush.msra.mxu0 0.0
        %1101 = vmatpush.msra.mxu0 0.0
        %1102 = vmatpush.msra.mxu0 0.0
        %1103 = vmatpush.msra.mxu0 0.0
        %1104 = vmatpush.msra.mxu0 0.0
        %1105 = vmatpush.msra.mxu0 0.0
        %1106 = vmatpush.msra.mxu0 0.0
        %1107 = vmatpush.msra.mxu0 0.0
        %1108 = vmatpush.msra.mxu0 0.0
        %1109 = vmatpush.msra.mxu0 0.0
        %1110 = vmatpush.msra.mxu0 0.0
        %1111 = vmatpush.msra.mxu0 0.0
        %1112 = vmatpush.msra.mxu0 0.0
        %1113 = vmatpush.msra.mxu0 0.0
        %1114 = vmatpush.msra.mxu0 %v863
        %1115 = vmatmul.f32.gmra.mxu0 %v1097
        %v1116 = vpop.f32.mrf.mxu0
        %v1117 = vadd.f32 0.0, %v1116
        %1118 = vdwg.mxu0
        %v1120 = vsel %vm885, %v1049, 0
        %1122 = vmatpush.msra.mxu0 0.0
        %1123 = vmatpush.msra.mxu0 0.0
        %1124 = vmatpush.msra.mxu0 0.0
        %1125 = vmatpush.msra.mxu0 0.0
        %1126 = vmatpush.msra.mxu0 0.0
        %1127 = vmatpush.msra.mxu0 0.0
        %1128 = vmatpush.msra.mxu0 0.0
        %1129 = vmatpush.msra.mxu0 0.0
        %1130 = vmatpush.msra.mxu0 0.0
        %1131 = vmatpush.msra.mxu0 0.0
        %1132 = vmatpush.msra.mxu0 0.0
        %1133 = vmatpush.msra.mxu0 0.0
        %1134 = vmatpush.msra.mxu0 0.0
        %1135 = vmatpush.msra.mxu0 0.0
        %1136 = vmatpush.msra.mxu0 0.0
        %1137 = vmatpush.msra.mxu0 %v883
        %1138 = vmatmul.f32.gmra.mxu0 %v1120
        %v1139 = vpop.f32.mrf.mxu0
        %v1140 = vadd.f32 0.0, %v1139
        %1141 = vdwg.mxu0
        %v1142 = vld [vmem:[%s7] sm:$0xff]
        %v1143 = vld [vmem:[%s7 + $0x8] sm:$0xff]
        %v1144 = vld [vmem:[%s7 + $0x10] sm:$0xff]
        %v1145 = vld [vmem:[%s7 + $0x18] sm:$0xff]
        %v1147 = vsel %vm885, %v1071, 0
        %1149 = vmatpush.msra.mxu0 0.0
        %1150 = vmatpush.msra.mxu0 0.0
        %1151 = vmatpush.msra.mxu0 0.0
        %1152 = vmatpush.msra.mxu0 0.0
        %1153 = vmatpush.msra.mxu0 0.0
        %1154 = vmatpush.msra.mxu0 0.0
        %1155 = vmatpush.msra.mxu0 0.0
        %1156 = vmatpush.msra.mxu0 0.0
        %1157 = vmatpush.msra.mxu0 0.0
        %1158 = vmatpush.msra.mxu0 0.0
        %1159 = vmatpush.msra.mxu0 0.0
        %1160 = vmatpush.msra.mxu0 0.0
        %1161 = vmatpush.msra.mxu0 0.0
        %1162 = vmatpush.msra.mxu0 0.0
        %1163 = vmatpush.msra.mxu0 0.0
        %1164 = vmatpush.msra.mxu0 %v1142
        %1165 = vmatmul.f32.gmra.mxu0 %v1147
        %v1166 = vpop.f32.mrf.mxu0
        %v1167 = vadd.f32 0.0, %v1166
        %1168 = vdwg.mxu0
        %v1170 = vsel %vm885, %v1094, 0
        %1172 = vmatpush.msra.mxu0 0.0
        %1173 = vmatpush.msra.mxu0 0.0
        %1174 = vmatpush.msra.mxu0 0.0
        %1175 = vmatpush.msra.mxu0 0.0
        %1176 = vmatpush.msra.mxu0 0.0
        %1177 = vmatpush.msra.mxu0 0.0
        %1178 = vmatpush.msra.mxu0 0.0
        %1179 = vmatpush.msra.mxu0 0.0
        %1180 = vmatpush.msra.mxu0 0.0
        %1181 = vmatpush.msra.mxu0 0.0
        %1182 = vmatpush.msra.mxu0 0.0
        %1183 = vmatpush.msra.mxu0 0.0
        %1184 = vmatpush.msra.mxu0 0.0
        %1185 = vmatpush.msra.mxu0 0.0
        %1186 = vmatpush.msra.mxu0 0.0
        %1187 = vmatpush.msra.mxu0 %v1143
        %1188 = vmatmul.f32.gmra.mxu0 %v1170
        %v1189 = vpop.f32.mrf.mxu0
        %v1190 = vadd.f32 0.0, %v1189
        %1191 = vdwg.mxu0
        %v1193 = vsel %vm885, %v1117, 0
        %1195 = vmatpush.msra.mxu0 0.0
        %1196 = vmatpush.msra.mxu0 0.0
        %1197 = vmatpush.msra.mxu0 0.0
        %1198 = vmatpush.msra.mxu0 0.0
        %1199 = vmatpush.msra.mxu0 0.0
        %1200 = vmatpush.msra.mxu0 0.0
        %1201 = vmatpush.msra.mxu0 0.0
        %1202 = vmatpush.msra.mxu0 0.0
        %1203 = vmatpush.msra.mxu0 0.0
        %1204 = vmatpush.msra.mxu0 0.0
        %1205 = vmatpush.msra.mxu0 0.0
        %1206 = vmatpush.msra.mxu0 0.0
        %1207 = vmatpush.msra.mxu0 0.0
        %1208 = vmatpush.msra.mxu0 0.0
        %1209 = vmatpush.msra.mxu0 0.0
        %1210 = vmatpush.msra.mxu0 %v1144
        %1211 = vmatmul.f32.gmra.mxu0 %v1193
        %v1212 = vpop.f32.mrf.mxu0
        %v1213 = vadd.f32 0.0, %v1212
        %1214 = vdwg.mxu0
        %v1216 = vsel %vm885, %v1140, 0
        %1218 = vmatpush.msra.mxu0 0.0
        %1219 = vmatpush.msra.mxu0 0.0
        %1220 = vmatpush.msra.mxu0 0.0
        %1221 = vmatpush.msra.mxu0 0.0
        %1222 = vmatpush.msra.mxu0 0.0
        %1223 = vmatpush.msra.mxu0 0.0
        %1224 = vmatpush.msra.mxu0 0.0
        %1225 = vmatpush.msra.mxu0 0.0
        %1226 = vmatpush.msra.mxu0 0.0
        %1227 = vmatpush.msra.mxu0 0.0
        %1228 = vmatpush.msra.mxu0 0.0
        %1229 = vmatpush.msra.mxu0 0.0
        %1230 = vmatpush.msra.mxu0 0.0
        %1231 = vmatpush.msra.mxu0 0.0
        %1232 = vmatpush.msra.mxu0 0.0
        %1233 = vmatpush.msra.mxu0 %v1145
        %1234 = vmatmul.f32.gmra.mxu0 %v1216
        %v1235 = vpop.f32.mrf.mxu0
        %v1236 = vadd.f32 0.0, %v1235
        %1237 = vdwg.mxu0
        %v1238 = vsel %vm577, %v1167, 0.0
        %v1239 = vsel %vm577, %v1190, 0.0
        %v1240 = vadd.f32 %v1238, %v1239
        %v1241 = vsel %vm577, %v1213, 0.0
        %v1242 = vadd.f32 %v1240, %v1241
        %v1243 = vsel %vm577, %v1236, 0.0
        %v1244 = vadd.f32 %v1242, %v1243
        %v1245 = vld [vmem:[%s8] sm:$0x1]
        %v1247 = vperm.slane %v1245, 0
        %v1249 = vadd.f32 %v1244, %v1247
        %v1250 = vadd.f32 %v544, %v1249
        %v1251 = vld [vmem:[%s9] sm:$0x1]
        %v1252 = vld [vmem:[%s10] sm:$0x1]
        %v1253 = vsel %vm577, %v1250, 0.0
        %1254 = vadd.xlane.f32.xlu0 %v1253
        %v1255 = vpop.xlane.xlu0 %1254
        %v1256 = vrcp.pop 32.0
        %v1257 = vmul.f32 32.0, %v1256
        %v1258 = vsub.f32 1.0, %v1257
        %v1259 = vmul.f32 %v1256, %v1258
        %v1260 = vadd.f32 %v1256, %v1259
        %vm1261 = vweird.f32 %v1256
        %v1262 = vsel %vm1261, %v1256, %v1260
        %v1263 = vmul.f32 %v1255, %v1262
        %v1264 = vsub.f32 %v1250, %v1263
        %v1265 = vmul.f32 %v1264, %v1264
        %v1266 = vsel %vm577, %v1265, 0.0
        %1267 = vadd.xlane.f32.xlu0 %v1266
        %v1268 = vpop.xlane.xlu0 %1267
        %v1269 = vmul.f32 %v1268, %v1262
        %v1270 = vadd.f32 %v1269, 1e-05
        %v1271 = vrsqrt.pop %v1270
        %v1272 = vmul.f32 %v1271, %v1270
        %v1273 = vmul.f32 %v1272, %v1271
        %v1274 = vmul.f32 0.5, %v1273
        %v1275 = vsub.f32 1.5, %v1274
        %v1276 = vmul.f32 %v1271, %v1275
        %vm1277 = vweird.f32 %v1270
        %vm1278 = vweird.f32 %v1271
        %vm1279 = vmor %vm1277, %vm1278
        %v1280 = vsel %vm1279, %v1271, %v1276
        %v1281 = vmul.f32 %v1264, %v1280
        %v1283 = vperm.slane %v1251, 0
        %v1285 = vmul.f32 %v1281, %v1283
        %v1287 = vperm.slane %v1252, 0
        %v1289 = vadd.f32 %v1285, %v1287
        %v1290 = vld [vmem:[%s11] sm:$0xff]
        %v1291 = vld [vmem:[%s11 + $0x8] sm:$0xff]
        %v1292 = vld [vmem:[%s11 + $0x10] sm:$0xff]
        %v1293 = vld [vmem:[%s11 + $0x18] sm:$0xff]
        %v1294 = vld [vmem:[%s12] sm:$0x1]
        %v1296 = vperm.slane %v1294, 0
        %v1299 = vsel %vm577, %v1289, 0
        %1301 = vmatpush.msra.mxu0 0.0
        %1302 = vmatpush.msra.mxu0 0.0
        %1303 = vmatpush.msra.mxu0 0.0
        %1304 = vmatpush.msra.mxu0 0.0
        %1305 = vmatpush.msra.mxu0 0.0
        %1306 = vmatpush.msra.mxu0 0.0
        %1307 = vmatpush.msra.mxu0 0.0
        %1308 = vmatpush.msra.mxu0 0.0
        %1309 = vmatpush.msra.mxu0 0.0
        %1310 = vmatpush.msra.mxu0 0.0
        %1311 = vmatpush.msra.mxu0 0.0
        %1312 = vmatpush.msra.mxu0 0.0
        %1313 = vmatpush.msra.mxu0 %v1293
        %1314 = vmatpush.msra.mxu0 %v1292
        %1315 = vmatpush.msra.mxu0 %v1291
        %1316 = vmatpush.msra.mxu0 %v1290
        %1317 = vmatmul.f32.gmra.mxu0 %v1299
        %v1318 = vpop.f32.mrf.mxu0
        %v1319 = vadd.f32 %v1296, %v1318
        %1320 = vdwg.mxu0
        %v1321 = vmax.f32 %v1319, 0.0
        %v1322 = vld [vmem:[%s13] sm:$0xff]
        %v1323 = vld [vmem:[%s13 + $0x8] sm:$0xff]
        %v1324 = vld [vmem:[%s13 + $0x10] sm:$0xff]
        %v1325 = vld [vmem:[%s13 + $0x18] sm:$0xff]
        %v1326 = vld [vmem:[%s13 + $0x20] sm:$0xff]
        %v1327 = vld [vmem:[%s13 + $0x28] sm:$0xff]
        %v1328 = vld [vmem:[%s13 + $0x30] sm:$0xff]
        %v1329 = vld [vmem:[%s13 + $0x38] sm:$0xff]
        %v1330 = vld [vmem:[%s14] sm:$0x1]
        %v1332 = vperm.slane %v1330, 0
        %vm1334 = vcmask 523264
        %v1336 = vsel %vm1334, %v1321, 0
        %1338 = vmatpush.msra.mxu0 0.0
        %1339 = vmatpush.msra.mxu0 0.0
        %1340 = vmatpush.msra.mxu0 0.0
        %1341 = vmatpush.msra.mxu0 0.0
        %1342 = vmatpush.msra.mxu0 0.0
        %1343 = vmatpush.msra.mxu0 0.0
        %1344 = vmatpush.msra.mxu0 0.0
        %1345 = vmatpush.msra.mxu0 0.0
        %1346 = vmatpush.msra.mxu0 %v1329
        %1347 = vmatpush.msra.mxu0 %v1328
        %1348 = vmatpush.msra.mxu0 %v1327
        %1349 = vmatpush.msra.mxu0 %v1326
        %1350 = vmatpush.msra.mxu0 %v1325
        %1351 = vmatpush.msra.mxu0 %v1324
        %1352 = vmatpush.msra.mxu0 %v1323
        %1353 = vmatpush.msra.mxu0 %v1322
        %1354 = vmatmul.f32.gmra.mxu0 %v1336
        %v1355 = vpop.f32.mrf.mxu0
        %v1356 = vadd.f32 %v1332, %v1355
        %1357 = vdwg.mxu0
        %v1358 = vadd.f32 %v1289, %v1356
        %v1359 = vld [vmem:[%s15] sm:$0x1]
        %v1360 = vld [vmem:[%s16] sm:$0x1]
        %v1361 = vsel %vm577, %v1358, 0.0
        %1362 = vadd.xlane.f32.xlu0 %v1361
        %v1363 = vpop.xlane.xlu0 %1362
        %v1364 = vmul.f32 %v1363, %v1262
        %v1365 = vsub.f32 %v1358, %v1364
        %v1366 = vmul.f32 %v1365, %v1365
        %v1367 = vsel %vm577, %v1366, 0.0
        %1368 = vadd.xlane.f32.xlu0 %v1367
        %v1369 = vpop.xlane.xlu0 %1368
        %v1370 = vmul.f32 %v1369, %v1262
        %v1371 = vadd.f32 %v1370, 1e-05
        %v1372 = vrsqrt.pop %v1371
        %v1373 = vmul.f32 %v1372, %v1371
        %v1374 = vmul.f32 %v1373, %v1372
        %v1375 = vmul.f32 0.5, %v1374
        %v1376 = vsub.f32 1.5, %v1375
        %v1377 = vmul.f32 %v1372, %v1376
        %vm1378 = vweird.f32 %v1371
        %vm1379 = vweird.f32 %v1372
        %vm1380 = vmor %vm1378, %vm1379
        %v1381 = vsel %vm1380, %v1372, %v1377
        %v1382 = vmul.f32 %v1365, %v1381
        %v1384 = vperm.slane %v1359, 0
        %v1386 = vmul.f32 %v1382, %v1384
        %v1388 = vperm.slane %v1360, 0
        %v1390 = vadd.f32 %v1386, %v1388
        %s1391 = scalar_lea.vmem %s1, 128
        %v1392 = vld [vmem:[%s1391] sm:$0xff]
        %v1393 = vld [vmem:[%s1391 + $0x8] sm:$0xff]
        %v1394 = vld [vmem:[%s1391 + $0x10] sm:$0xff]
        %v1395 = vld [vmem:[%s1391 + $0x18] sm:$0xff]
        %v1396 = vld [vmem:[%s1391 + $0x20] sm:$0xff]
        %v1397 = vld [vmem:[%s1391 + $0x28] sm:$0xff]
        %v1398 = vld [vmem:[%s1391 + $0x30] sm:$0xff]
        %v1399 = vld [vmem:[%s1391 + $0x38] sm:$0xff]
        %v1400 = vld [vmem:[%s1391 + $0x40] sm:$0xff]
        %v1401 = vld [vmem:[%s1391 + $0x48] sm:$0xff]
        %v1402 = vld [vmem:[%s1391 + $0x50] sm:$0xff]
        %v1403 = vld [vmem:[%s1391 + $0x58] sm:$0xff]
        %v1404 = vld [vmem:[%s1391 + $0x60] sm:$0xff]
        %v1405 = vld [vmem:[%s1391 + $0x68] sm:$0xff]
        %v1406 = vld [vmem:[%s1391 + $0x70] sm:$0xff]
        %v1407 = vld [vmem:[%s1391 + $0x78] sm:$0xff]
        %s1408 = scalar_lea.vmem %s4, 4
        %v1409 = vld [vmem:[%s1408] sm:$0x1]
        %v1410 = vld [vmem:[%s1408 + $0x1] sm:$0x1]
        %v1411 = vld [vmem:[%s1408 + $0x2] sm:$0x1]
        %v1412 = vld [vmem:[%s1408 + $0x3] sm:$0x1]
        %v1417 = vperm.slane %v1409, 0
        %v1418 = vperm.slane %v1410, 0
        %v1419 = vperm.slane %v1411, 0
        %v1420 = vperm.slane %v1412, 0
        %v1426 = vsel %vm577, %v1390, 0
        %1428 = vmatpush.msra.mxu0 0.0
        %1429 = vmatpush.msra.mxu0 0.0
        %1430 = vmatpush.msra.mxu0 0.0
        %1431 = vmatpush.msra.mxu0 0.0
        %1432 = vmatpush.msra.mxu0 0.0
        %1433 = vmatpush.msra.mxu0 0.0
        %1434 = vmatpush.msra.mxu0 0.0
        %1435 = vmatpush.msra.mxu0 0.0
        %1436 = vmatpush.msra.mxu0 0.0
        %1437 = vmatpush.msra.mxu0 0.0
        %1438 = vmatpush.msra.mxu0 0.0
        %1439 = vmatpush.msra.mxu0 0.0
        %1440 = vmatpush.msra.mxu0 %v1395
        %1441 = vmatpush.msra.mxu0 %v1394
        %1442 = vmatpush.msra.mxu0 %v1393
        %1443 = vmatpush.msra.mxu0 %v1392
        %1444 = vmatmul.f32.gmra.mxu0 %v1426
        %v1445 = vpop.f32.mrf.mxu0
        %v1446 = vadd.f32 %v1417, %v1445
        %1447 = vdwg.mxu0
        %1448 = vmatpush.msra.mxu0 0.0
        %1449 = vmatpush.msra.mxu0 0.0
        %1450 = vmatpush.msra.mxu0 0.0
        %1451 = vmatpush.msra.mxu0 0.0
        %1452 = vmatpush.msra.mxu0 0.0
        %1453 = vmatpush.msra.mxu0 0.0
        %1454 = vmatpush.msra.mxu0 0.0
        %1455 = vmatpush.msra.mxu0 0.0
        %1456 = vmatpush.msra.mxu0 0.0
        %1457 = vmatpush.msra.mxu0 0.0
        %1458 = vmatpush.msra.mxu0 0.0
        %1459 = vmatpush.msra.mxu0 0.0
        %1460 = vmatpush.msra.mxu0 %v1399
        %1461 = vmatpush.msra.mxu0 %v1398
        %1462 = vmatpush.msra.mxu0 %v1397
        %1463 = vmatpush.msra.mxu0 %v1396
        %1464 = vmatmul.f32.gmra.mxu0 %v1426
        %v1465 = vpop.f32.mrf.mxu0
        %v1466 = vadd.f32 %v1418, %v1465
        %1467 = vdwg.mxu0
        %1468 = vmatpush.msra.mxu0 0.0
        %1469 = vmatpush.msra.mxu0 0.0
        %1470 = vmatpush.msra.mxu0 0.0
        %1471 = vmatpush.msra.mxu0 0.0
        %1472 = vmatpush.msra.mxu0 0.0
        %1473 = vmatpush.msra.mxu0 0.0
        %1474 = vmatpush.msra.mxu0 0.0
        %1475 = vmatpush.msra.mxu0 0.0
        %1476 = vmatpush.msra.mxu0 0.0
        %1477 = vmatpush.msra.mxu0 0.0
        %1478 = vmatpush.msra.mxu0 0.0
        %1479 = vmatpush.msra.mxu0 0.0
        %1480 = vmatpush.msra.mxu0 %v1403
        %1481 = vmatpush.msra.mxu0 %v1402
        %1482 = vmatpush.msra.mxu0 %v1401
        %1483 = vmatpush.msra.mxu0 %v1400
        %1484 = vmatmul.f32.gmra.mxu0 %v1426
        %v1485 = vpop.f32.mrf.mxu0
        %v1486 = vadd.f32 %v1419, %v1485
        %1487 = vdwg.mxu0
        %1488 = vmatpush.msra.mxu0 0.0
        %1489 = vmatpush.msra.mxu0 0.0
        %1490 = vmatpush.msra.mxu0 0.0
        %1491 = vmatpush.msra.mxu0 0.0
        %1492 = vmatpush.msra.mxu0 0.0
        %1493 = vmatpush.msra.mxu0 0.0
        %1494 = vmatpush.msra.mxu0 0.0
        %1495 = vmatpush.msra.mxu0 0.0
        %1496 = vmatpush.msra.mxu0 0.0
        %1497 = vmatpush.msra.mxu0 0.0
        %1498 = vmatpush.msra.mxu0 0.0
        %1499 = vmatpush.msra.mxu0 0.0
        %1500 = vmatpush.msra.mxu0 %v1407
        %1501 = vmatpush.msra.mxu0 %v1406
        %1502 = vmatpush.msra.mxu0 %v1405
        %1503 = vmatpush.msra.mxu0 %v1404
        %1504 = vmatmul.f32.gmra.mxu0 %v1426
        %v1505 = vpop.f32.mrf.mxu0
        %v1506 = vadd.f32 %v1420, %v1505
        %1507 = vdwg.mxu0
        %s1508 = scalar_lea.vmem %s2, 128
        %v1509 = vld [vmem:[%s1508] sm:$0xff]
        %v1510 = vld [vmem:[%s1508 + $0x8] sm:$0xff]
        %v1511 = vld [vmem:[%s1508 + $0x10] sm:$0xff]
        %v1512 = vld [vmem:[%s1508 + $0x18] sm:$0xff]
        %v1513 = vld [vmem:[%s1508 + $0x20] sm:$0xff]
        %v1514 = vld [vmem:[%s1508 + $0x28] sm:$0xff]
        %v1515 = vld [vmem:[%s1508 + $0x30] sm:$0xff]
        %v1516 = vld [vmem:[%s1508 + $0x38] sm:$0xff]
        %v1517 = vld [vmem:[%s1508 + $0x40] sm:$0xff]
        %v1518 = vld [vmem:[%s1508 + $0x48] sm:$0xff]
        %v1519 = vld [vmem:[%s1508 + $0x50] sm:$0xff]
        %v1520 = vld [vmem:[%s1508 + $0x58] sm:$0xff]
        %v1521 = vld [vmem:[%s1508 + $0x60] sm:$0xff]
        %v1522 = vld [vmem:[%s1508 + $0x68] sm:$0xff]
        %v1523 = vld [vmem:[%s1508 + $0x70] sm:$0xff]
        %v1524 = vld [vmem:[%s1508 + $0x78] sm:$0xff]
        %s1525 = scalar_lea.vmem %s5, 4
        %v1526 = vld [vmem:[%s1525] sm:$0x1]
        %v1527 = vld [vmem:[%s1525 + $0x1] sm:$0x1]
        %v1528 = vld [vmem:[%s1525 + $0x2] sm:$0x1]
        %v1529 = vld [vmem:[%s1525 + $0x3] sm:$0x1]
        %v1534 = vperm.slane %v1526, 0
        %v1535 = vperm.slane %v1527, 0
        %v1536 = vperm.slane %v1528, 0
        %v1537 = vperm.slane %v1529, 0
        %1542 = vmatpush.msra.mxu0 0.0
        %1543 = vmatpush.msra.mxu0 0.0
        %1544 = vmatpush.msra.mxu0 0.0
        %1545 = vmatpush.msra.mxu0 0.0
        %1546 = vmatpush.msra.mxu0 0.0
        %1547 = vmatpush.msra.mxu0 0.0
        %1548 = vmatpush.msra.mxu0 0.0
        %1549 = vmatpush.msra.mxu0 0.0
        %1550 = vmatpush.msra.mxu0 0.0
        %1551 = vmatpush.msra.mxu0 0.0
        %1552 = vmatpush.msra.mxu0 0.0
        %1553 = vmatpush.msra.mxu0 0.0
        %1554 = vmatpush.msra.mxu0 %v1512
        %1555 = vmatpush.msra.mxu0 %v1511
        %1556 = vmatpush.msra.mxu0 %v1510
        %1557 = vmatpush.msra.mxu0 %v1509
        %1558 = vmatmul.f32.gmra.mxu0 %v1426
        %v1559 = vpop.f32.mrf.mxu0
        %v1560 = vadd.f32 %v1534, %v1559
        %1561 = vdwg.mxu0
        %1562 = vmatpush.msra.mxu0 0.0
        %1563 = vmatpush.msra.mxu0 0.0
        %1564 = vmatpush.msra.mxu0 0.0
        %1565 = vmatpush.msra.mxu0 0.0
        %1566 = vmatpush.msra.mxu0 0.0
        %1567 = vmatpush.msra.mxu0 0.0
        %1568 = vmatpush.msra.mxu0 0.0
        %1569 = vmatpush.msra.mxu0 0.0
        %1570 = vmatpush.msra.mxu0 0.0
        %1571 = vmatpush.msra.mxu0 0.0
        %1572 = vmatpush.msra.mxu0 0.0
        %1573 = vmatpush.msra.mxu0 0.0
        %1574 = vmatpush.msra.mxu0 %v1516
        %1575 = vmatpush.msra.mxu0 %v1515
        %1576 = vmatpush.msra.mxu0 %v1514
        %1577 = vmatpush.msra.mxu0 %v1513
        %1578 = vmatmul.f32.gmra.mxu0 %v1426
        %v1579 = vpop.f32.mrf.mxu0
        %v1580 = vadd.f32 %v1535, %v1579
        %1581 = vdwg.mxu0
        %1582 = vmatpush.msra.mxu0 0.0
        %1583 = vmatpush.msra.mxu0 0.0
        %1584 = vmatpush.msra.mxu0 0.0
        %1585 = vmatpush.msra.mxu0 0.0
        %1586 = vmatpush.msra.mxu0 0.0
        %1587 = vmatpush.msra.mxu0 0.0
        %1588 = vmatpush.msra.mxu0 0.0
        %1589 = vmatpush.msra.mxu0 0.0
        %1590 = vmatpush.msra.mxu0 0.0
        %1591 = vmatpush.msra.mxu0 0.0
        %1592 = vmatpush.msra.mxu0 0.0
        %1593 = vmatpush.msra.mxu0 0.0
        %1594 = vmatpush.msra.mxu0 %v1520
        %1595 = vmatpush.msra.mxu0 %v1519
        %1596 = vmatpush.msra.mxu0 %v1518
        %1597 = vmatpush.msra.mxu0 %v1517
        %1598 = vmatmul.f32.gmra.mxu0 %v1426
        %v1599 = vpop.f32.mrf.mxu0
        %v1600 = vadd.f32 %v1536, %v1599
        %1601 = vdwg.mxu0
        %1602 = vmatpush.msra.mxu0 0.0
        %1603 = vmatpush.msra.mxu0 0.0
        %1604 = vmatpush.msra.mxu0 0.0
        %1605 = vmatpush.msra.mxu0 0.0
        %1606 = vmatpush.msra.mxu0 0.0
        %1607 = vmatpush.msra.mxu0 0.0
        %1608 = vmatpush.msra.mxu0 0.0
        %1609 = vmatpush.msra.mxu0 0.0
        %1610 = vmatpush.msra.mxu0 0.0
        %1611 = vmatpush.msra.mxu0 0.0
        %1612 = vmatpush.msra.mxu0 0.0
        %1613 = vmatpush.msra.mxu0 0.0
        %1614 = vmatpush.msra.mxu0 %v1524
        %1615 = vmatpush.msra.mxu0 %v1523
        %1616 = vmatpush.msra.mxu0 %v1522
        %1617 = vmatpush.msra.mxu0 %v1521
        %1618 = vmatmul.f32.gmra.mxu0 %v1426
        %v1619 = vpop.f32.mrf.mxu0
        %v1620 = vadd.f32 %v1537, %v1619
        %1621 = vdwg.mxu0
        %s1622 = scalar_lea.vmem %s3, 128
        %v1623 = vld [vmem:[%s1622] sm:$0xff]
        %v1624 = vld [vmem:[%s1622 + $0x8] sm:$0xff]
        %v1625 = vld [vmem:[%s1622 + $0x10] sm:$0xff]
        %v1626 = vld [vmem:[%s1622 + $0x18] sm:$0xff]
        %v1627 = vld [vmem:[%s1622 + $0x20] sm:$0xff]
        %v1628 = vld [vmem:[%s1622 + $0x28] sm:$0xff]
        %v1629 = vld [vmem:[%s1622 + $0x30] sm:$0xff]
        %v1630 = vld [vmem:[%s1622 + $0x38] sm:$0xff]
        %v1631 = vld [vmem:[%s1622 + $0x40] sm:$0xff]
        %v1632 = vld [vmem:[%s1622 + $0x48] sm:$0xff]
        %v1633 = vld [vmem:[%s1622 + $0x50] sm:$0xff]
        %v1634 = vld [vmem:[%s1622 + $0x58] sm:$0xff]
        %v1635 = vld [vmem:[%s1622 + $0x60] sm:$0xff]
        %v1636 = vld [vmem:[%s1622 + $0x68] sm:$0xff]
        %v1637 = vld [vmem:[%s1622 + $0x70] sm:$0xff]
        %v1638 = vld [vmem:[%s1622 + $0x78] sm:$0xff]
        %s1639 = scalar_lea.vmem %s6, 4
        %v1640 = vld [vmem:[%s1639] sm:$0x1]
        %v1641 = vld [vmem:[%s1639 + $0x1] sm:$0x1]
        %v1642 = vld [vmem:[%s1639 + $0x2] sm:$0x1]
        %v1643 = vld [vmem:[%s1639 + $0x3] sm:$0x1]
        %v1648 = vperm.slane %v1640, 0
        %v1649 = vperm.slane %v1641, 0
        %v1650 = vperm.slane %v1642, 0
        %v1651 = vperm.slane %v1643, 0
        %1656 = vmatpush.msra.mxu0 0.0
        %1657 = vmatpush.msra.mxu0 0.0
        %1658 = vmatpush.msra.mxu0 0.0
        %1659 = vmatpush.msra.mxu0 0.0
        %1660 = vmatpush.msra.mxu0 0.0
        %1661 = vmatpush.msra.mxu0 0.0
        %1662 = vmatpush.msra.mxu0 0.0
        %1663 = vmatpush.msra.mxu0 0.0
        %1664 = vmatpush.msra.mxu0 0.0
        %1665 = vmatpush.msra.mxu0 0.0
        %1666 = vmatpush.msra.mxu0 0.0
        %1667 = vmatpush.msra.mxu0 0.0
        %1668 = vmatpush.msra.mxu0 %v1626
        %1669 = vmatpush.msra.mxu0 %v1625
        %1670 = vmatpush.msra.mxu0 %v1624
        %1671 = vmatpush.msra.mxu0 %v1623
        %1672 = vmatmul.f32.gmra.mxu0 %v1426
        %v1673 = vpop.f32.mrf.mxu0
        %v1674 = vadd.f32 %v1648, %v1673
        %1675 = vdwg.mxu0
        %1676 = vmatpush.msra.mxu0 0.0
        %1677 = vmatpush.msra.mxu0 0.0
        %1678 = vmatpush.msra.mxu0 0.0
        %1679 = vmatpush.msra.mxu0 0.0
        %1680 = vmatpush.msra.mxu0 0.0
        %1681 = vmatpush.msra.mxu0 0.0
        %1682 = vmatpush.msra.mxu0 0.0
        %1683 = vmatpush.msra.mxu0 0.0
        %1684 = vmatpush.msra.mxu0 0.0
        %1685 = vmatpush.msra.mxu0 0.0
        %1686 = vmatpush.msra.mxu0 0.0
        %1687 = vmatpush.msra.mxu0 0.0
        %1688 = vmatpush.msra.mxu0 %v1630
        %1689 = vmatpush.msra.mxu0 %v1629
        %1690 = vmatpush.msra.mxu0 %v1628
        %1691 = vmatpush.msra.mxu0 %v1627
        %1692 = vmatmul.f32.gmra.mxu0 %v1426
        %v1693 = vpop.f32.mrf.mxu0
        %v1694 = vadd.f32 %v1649, %v1693
        %1695 = vdwg.mxu0
        %1696 = vmatpush.msra.mxu0 0.0
        %1697 = vmatpush.msra.mxu0 0.0
        %1698 = vmatpush.msra.mxu0 0.0
        %1699 = vmatpush.msra.mxu0 0.0
        %1700 = vmatpush.msra.mxu0 0.0
        %1701 = vmatpush.msra.mxu0 0.0
        %1702 = vmatpush.msra.mxu0 0.0
        %1703 = vmatpush.msra.mxu0 0.0
        %1704 = vmatpush.msra.mxu0 0.0
        %1705 = vmatpush.msra.mxu0 0.0
        %1706 = vmatpush.msra.mxu0 0.0
        %1707 = vmatpush.msra.mxu0 0.0
        %1708 = vmatpush.msra.mxu0 %v1634
        %1709 = vmatpush.msra.mxu0 %v1633
        %1710 = vmatpush.msra.mxu0 %v1632
        %1711 = vmatpush.msra.mxu0 %v1631
        %1712 = vmatmul.f32.gmra.mxu0 %v1426
        %v1713 = vpop.f32.mrf.mxu0
        %v1714 = vadd.f32 %v1650, %v1713
        %1715 = vdwg.mxu0
        %1716 = vmatpush.msra.mxu0 0.0
        %1717 = vmatpush.msra.mxu0 0.0
        %1718 = vmatpush.msra.mxu0 0.0
        %1719 = vmatpush.msra.mxu0 0.0
        %1720 = vmatpush.msra.mxu0 0.0
        %1721 = vmatpush.msra.mxu0 0.0
        %1722 = vmatpush.msra.mxu0 0.0
        %1723 = vmatpush.msra.mxu0 0.0
        %1724 = vmatpush.msra.mxu0 0.0
        %1725 = vmatpush.msra.mxu0 0.0
        %1726 = vmatpush.msra.mxu0 0.0
        %1727 = vmatpush.msra.mxu0 0.0
        %1728 = vmatpush.msra.mxu0 %v1638
        %1729 = vmatpush.msra.mxu0 %v1637
        %1730 = vmatpush.msra.mxu0 %v1636
        %1731 = vmatpush.msra.mxu0 %v1635
        %1732 = vmatmul.f32.gmra.mxu0 %v1426
        %v1733 = vpop.f32.mrf.mxu0
        %v1734 = vadd.f32 %v1651, %v1733
        %1735 = vdwg.mxu0
        %v1737 = vsel %vm885, %v1446, 0
        %v1740 = vsel %vm885, %v1560, 0
        %1742 = vmatpush.xpose.msra.mxu0 0.0
        %1743 = vmatpush.xpose.msra.mxu0 0.0
        %1744 = vmatpush.xpose.msra.mxu0 0.0
        %1745 = vmatpush.xpose.msra.mxu0 0.0
        %1746 = vmatpush.xpose.msra.mxu0 0.0
        %1747 = vmatpush.xpose.msra.mxu0 0.0
        %1748 = vmatpush.xpose.msra.mxu0 0.0
        %1749 = vmatpush.xpose.msra.mxu0 0.0
        %1750 = vmatpush.xpose.msra.mxu0 0.0
        %1751 = vmatpush.xpose.msra.mxu0 0.0
        %1752 = vmatpush.xpose.msra.mxu0 0.0
        %1753 = vmatpush.xpose.msra.mxu0 0.0
        %1754 = vmatpush.xpose.msra.mxu0 0.0
        %1755 = vmatpush.xpose.msra.mxu0 0.0
        %1756 = vmatpush.xpose.msra.mxu0 0.0
        %1757 = vmatpush.xpose.msra.mxu0 %v1740
        %1758 = vmatmul.f32.gmra.mxu0 %v1737
        %v1759 = vpop.f32.mrf.mxu0
        %v1760 = vadd.f32 0.0, %v1759
        %1761 = vdwg.mxu0
        %v1763 = vsel %vm885, %v1466, 0
        %v1766 = vsel %vm885, %v1580, 0
        %1768 = vmatpush.xpose.msra.mxu0 0.0
        %1769 = vmatpush.xpose.msra.mxu0 0.0
        %1770 = vmatpush.xpose.msra.mxu0 0.0
        %1771 = vmatpush.xpose.msra.mxu0 0.0
        %1772 = vmatpush.xpose.msra.mxu0 0.0
        %1773 = vmatpush.xpose.msra.mxu0 0.0
        %1774 = vmatpush.xpose.msra.mxu0 0.0
        %1775 = vmatpush.xpose.msra.mxu0 0.0
        %1776 = vmatpush.xpose.msra.mxu0 0.0
        %1777 = vmatpush.xpose.msra.mxu0 0.0
        %1778 = vmatpush.xpose.msra.mxu0 0.0
        %1779 = vmatpush.xpose.msra.mxu0 0.0
        %1780 = vmatpush.xpose.msra.mxu0 0.0
        %1781 = vmatpush.xpose.msra.mxu0 0.0
        %1782 = vmatpush.xpose.msra.mxu0 0.0
        %1783 = vmatpush.xpose.msra.mxu0 %v1766
        %1784 = vmatmul.f32.gmra.mxu0 %v1763
        %v1785 = vpop.f32.mrf.mxu0
        %v1786 = vadd.f32 0.0, %v1785
        %1787 = vdwg.mxu0
        %v1789 = vsel %vm885, %v1486, 0
        %v1792 = vsel %vm885, %v1600, 0
        %1794 = vmatpush.xpose.msra.mxu0 0.0
        %1795 = vmatpush.xpose.msra.mxu0 0.0
        %1796 = vmatpush.xpose.msra.mxu0 0.0
        %1797 = vmatpush.xpose.msra.mxu0 0.0
        %1798 = vmatpush.xpose.msra.mxu0 0.0
        %1799 = vmatpush.xpose.msra.mxu0 0.0
        %1800 = vmatpush.xpose.msra.mxu0 0.0
        %1801 = vmatpush.xpose.msra.mxu0 0.0
        %1802 = vmatpush.xpose.msra.mxu0 0.0
        %1803 = vmatpush.xpose.msra.mxu0 0.0
        %1804 = vmatpush.xpose.msra.mxu0 0.0
        %1805 = vmatpush.xpose.msra.mxu0 0.0
        %1806 = vmatpush.xpose.msra.mxu0 0.0
        %1807 = vmatpush.xpose.msra.mxu0 0.0
        %1808 = vmatpush.xpose.msra.mxu0 0.0
        %1809 = vmatpush.xpose.msra.mxu0 %v1792
        %1810 = vmatmul.f32.gmra.mxu0 %v1789
        %v1811 = vpop.f32.mrf.mxu0
        %v1812 = vadd.f32 0.0, %v1811
        %1813 = vdwg.mxu0
        %v1815 = vsel %vm885, %v1506, 0
        %v1818 = vsel %vm885, %v1620, 0
        %1820 = vmatpush.xpose.msra.mxu0 0.0
        %1821 = vmatpush.xpose.msra.mxu0 0.0
        %1822 = vmatpush.xpose.msra.mxu0 0.0
        %1823 = vmatpush.xpose.msra.mxu0 0.0
        %1824 = vmatpush.xpose.msra.mxu0 0.0
        %1825 = vmatpush.xpose.msra.mxu0 0.0
        %1826 = vmatpush.xpose.msra.mxu0 0.0
        %1827 = vmatpush.xpose.msra.mxu0 0.0
        %1828 = vmatpush.xpose.msra.mxu0 0.0
        %1829 = vmatpush.xpose.msra.mxu0 0.0
        %1830 = vmatpush.xpose.msra.mxu0 0.0
        %1831 = vmatpush.xpose.msra.mxu0 0.0
        %1832 = vmatpush.xpose.msra.mxu0 0.0
        %1833 = vmatpush.xpose.msra.mxu0 0.0
        %1834 = vmatpush.xpose.msra.mxu0 0.0
        %1835 = vmatpush.xpose.msra.mxu0 %v1818
        %1836 = vmatmul.f32.gmra.mxu0 %v1815
        %v1837 = vpop.f32.mrf.mxu0
        %v1838 = vadd.f32 0.0, %v1837
        %1839 = vdwg.mxu0
        %v1840 = vmul.f32 %v1760, 0.35355338
        %v1841 = vmul.f32 %v1786, 0.35355338
        %v1842 = vmul.f32 %v1812, 0.35355338
        %v1843 = vmul.f32 %v1838, 0.35355338
        %v1844 = vsel %vm885, %v1840, -inf
        %1845 = vmax.xlane.f32.xlu0 %v1844
        %v1846 = vpop.xlane.xlu0 %1845
        %v1847 = vsel %vm885, %v1841, -inf
        %1848 = vmax.xlane.f32.xlu0 %v1847
        %v1849 = vpop.xlane.xlu0 %1848
        %v1850 = vsel %vm885, %v1842, -inf
        %1851 = vmax.xlane.f32.xlu0 %v1850
        %v1852 = vpop.xlane.xlu0 %1851
        %v1853 = vsel %vm885, %v1843, -inf
        %1854 = vmax.xlane.f32.xlu0 %v1853
        %v1855 = vpop.xlane.xlu0 %1854
        %v1856 = vsub.f32 %v1840, %v1846
        %v1857 = vsub.f32 %v1841, %v1849
        %v1858 = vsub.f32 %v1842, %v1852
        %v1859 = vsub.f32 %v1843, %v1855
        %v1860 = vmul.f32 %v1856, 1.442695
        %v1861 = vpow.pop %v1860
        %v1862 = vmul.f32 %v1857, 1.442695
        %v1863 = vpow.pop %v1862
        %v1864 = vmul.f32 %v1858, 1.442695
        %v1865 = vpow.pop %v1864
        %v1866 = vmul.f32 %v1859, 1.442695
        %v1867 = vpow.pop %v1866
        %v1868 = vsel %vm885, %v1861, 0.0
        %1869 = vadd.xlane.f32.xlu0 %v1868
        %v1870 = vpop.xlane.xlu0 %1869
        %v1871 = vsel %vm885, %v1863, 0.0
        %1872 = vadd.xlane.f32.xlu0 %v1871
        %v1873 = vpop.xlane.xlu0 %1872
        %v1874 = vsel %vm885, %v1865, 0.0
        %1875 = vadd.xlane.f32.xlu0 %v1874
        %v1876 = vpop.xlane.xlu0 %1875
        %v1877 = vsel %vm885, %v1867, 0.0
        %1878 = vadd.xlane.f32.xlu0 %v1877
        %v1879 = vpop.xlane.xlu0 %1878
        %v1880 = vrcp.pop %v1870
        %v1881 = vrcp.pop %v1873
        %v1882 = vrcp.pop %v1876
        %v1883 = vrcp.pop %v1879
        %v1884 = vmul.f32 %v1870, %v1880
        %v1885 = vmul.f32 %v1873, %v1881
        %v1886 = vmul.f32 %v1876, %v1882
        %v1887 = vmul.f32 %v1879, %v1883
        %v1888 = vsub.f32 2.0, %v1884
        %v1889 = vsub.f32 2.0, %v1885
        %v1890 = vsub.f32 2.0, %v1886
        %v1891 = vsub.f32 2.0, %v1887
        %v1892 = vmul.f32 %v1880, %v1888
        %v1893 = vmul.f32 %v1881, %v1889
        %v1894 = vmul.f32 %v1882, %v1890
        %v1895 = vmul.f32 %v1883, %v1891
        %v1896 = vmul.f32 %v1861, %v1892
        %v1897 = vmul.f32 %v1863, %v1893
        %v1898 = vmul.f32 %v1865, %v1894
        %v1899 = vmul.f32 %v1867, %v1895
        %v1901 = vsel %vm885, %v1896, 0
        %1903 = vmatpush.msra.mxu0 0.0
        %1904 = vmatpush.msra.mxu0 0.0
        %1905 = vmatpush.msra.mxu0 0.0
        %1906 = vmatpush.msra.mxu0 0.0
        %1907 = vmatpush.msra.mxu0 0.0
        %1908 = vmatpush.msra.mxu0 0.0
        %1909 = vmatpush.msra.mxu0 0.0
        %1910 = vmatpush.msra.mxu0 0.0
        %1911 = vmatpush.msra.mxu0 0.0
        %1912 = vmatpush.msra.mxu0 0.0
        %1913 = vmatpush.msra.mxu0 0.0
        %1914 = vmatpush.msra.mxu0 0.0
        %1915 = vmatpush.msra.mxu0 0.0
        %1916 = vmatpush.msra.mxu0 0.0
        %1917 = vmatpush.msra.mxu0 0.0
        %1918 = vmatpush.msra.mxu0 %v1674
        %1919 = vmatmul.f32.gmra.mxu0 %v1901
        %v1920 = vpop.f32.mrf.mxu0
        %v1921 = vadd.f32 0.0, %v1920
        %1922 = vdwg.mxu0
        %v1924 = vsel %vm885, %v1897, 0
        %1926 = vmatpush.msra.mxu0 0.0
        %1927 = vmatpush.msra.mxu0 0.0
        %1928 = vmatpush.msra.mxu0 0.0
        %1929 = vmatpush.msra.mxu0 0.0
        %1930 = vmatpush.msra.mxu0 0.0
        %1931 = vmatpush.msra.mxu0 0.0
        %1932 = vmatpush.msra.mxu0 0.0
        %1933 = vmatpush.msra.mxu0 0.0
        %1934 = vmatpush.msra.mxu0 0.0
        %1935 = vmatpush.msra.mxu0 0.0
        %1936 = vmatpush.msra.mxu0 0.0
        %1937 = vmatpush.msra.mxu0 0.0
        %1938 = vmatpush.msra.mxu0 0.0
        %1939 = vmatpush.msra.mxu0 0.0
        %1940 = vmatpush.msra.mxu0 0.0
        %1941 = vmatpush.msra.mxu0 %v1694
        %1942 = vmatmul.f32.gmra.mxu0 %v1924
        %v1943 = vpop.f32.mrf.mxu0
        %v1944 = vadd.f32 0.0, %v1943
        %1945 = vdwg.mxu0
        %v1947 = vsel %vm885, %v1898, 0
        %1949 = vmatpush.msra.mxu0 0.0
        %1950 = vmatpush.msra.mxu0 0.0
        %1951 = vmatpush.msra.mxu0 0.0
        %1952 = vmatpush.msra.mxu0 0.0
        %1953 = vmatpush.msra.mxu0 0.0
        %1954 = vmatpush.msra.mxu0 0.0
        %1955 = vmatpush.msra.mxu0 0.0
        %1956 = vmatpush.msra.mxu0 0.0
        %1957 = vmatpush.msra.mxu0 0.0
        %1958 = vmatpush.msra.mxu0 0.0
        %1959 = vmatpush.msra.mxu0 0.0
        %1960 = vmatpush.msra.mxu0 0.0
        %1961 = vmatpush.msra.mxu0 0.0
        %1962 = vmatpush.msra.mxu0 0.0
        %1963 = vmatpush.msra.mxu0 0.0
        %1964 = vmatpush.msra.mxu0 %v1714
        %1965 = vmatmul.f32.gmra.mxu0 %v1947
        %v1966 = vpop.f32.mrf.mxu0
        %v1967 = vadd.f32 0.0, %v1966
        %1968 = vdwg.mxu0
        %v1970 = vsel %vm885, %v1899, 0
        %1972 = vmatpush.msra.mxu0 0.0
        %1973 = vmatpush.msra.mxu0 0.0
        %1974 = vmatpush.msra.mxu0 0.0
        %1975 = vmatpush.msra.mxu0 0.0
        %1976 = vmatpush.msra.mxu0 0.0
        %1977 = vmatpush.msra.mxu0 0.0
        %1978 = vmatpush.msra.mxu0 0.0
        %1979 = vmatpush.msra.mxu0 0.0
        %1980 = vmatpush.msra.mxu0 0.0
        %1981 = vmatpush.msra.mxu0 0.0
        %1982 = vmatpush.msra.mxu0 0.0
        %1983 = vmatpush.msra.mxu0 0.0
        %1984 = vmatpush.msra.mxu0 0.0
        %1985 = vmatpush.msra.mxu0 0.0
        %1986 = vmatpush.msra.mxu0 0.0
        %1987 = vmatpush.msra.mxu0 %v1734
        %1988 = vmatmul.f32.gmra.mxu0 %v1970
        %v1989 = vpop.f32.mrf.mxu0
        %v1990 = vadd.f32 0.0, %v1989
        %1991 = vdwg.mxu0
        %s1992 = scalar_lea.vmem %s7, 32
        %v1993 = vld [vmem:[%s1992] sm:$0xff]
        %v1994 = vld [vmem:[%s1992 + $0x8] sm:$0xff]
        %v1995 = vld [vmem:[%s1992 + $0x10] sm:$0xff]
        %v1996 = vld [vmem:[%s1992 + $0x18] sm:$0xff]
        %v1998 = vsel %vm885, %v1921, 0
        %2000 = vmatpush.msra.mxu0 0.0
        %2001 = vmatpush.msra.mxu0 0.0
        %2002 = vmatpush.msra.mxu0 0.0
        %2003 = vmatpush.msra.mxu0 0.0
        %2004 = vmatpush.msra.mxu0 0.0
        %2005 = vmatpush.msra.mxu0 0.0
        %2006 = vmatpush.msra.mxu0 0.0
        %2007 = vmatpush.msra.mxu0 0.0
        %2008 = vmatpush.msra.mxu0 0.0
        %2009 = vmatpush.msra.mxu0 0.0
        %2010 = vmatpush.msra.mxu0 0.0
        %2011 = vmatpush.msra.mxu0 0.0
        %2012 = vmatpush.msra.mxu0 0.0
        %2013 = vmatpush.msra.mxu0 0.0
        %2014 = vmatpush.msra.mxu0 0.0
        %2015 = vmatpush.msra.mxu0 %v1993
        %2016 = vmatmul.f32.gmra.mxu0 %v1998
        %v2017 = vpop.f32.mrf.mxu0
        %v2018 = vadd.f32 0.0, %v2017
        %2019 = vdwg.mxu0
        %v2021 = vsel %vm885, %v1944, 0
        %2023 = vmatpush.msra.mxu0 0.0
        %2024 = vmatpush.msra.mxu0 0.0
        %2025 = vmatpush.msra.mxu0 0.0
        %2026 = vmatpush.msra.mxu0 0.0
        %2027 = vmatpush.msra.mxu0 0.0
        %2028 = vmatpush.msra.mxu0 0.0
        %2029 = vmatpush.msra.mxu0 0.0
        %2030 = vmatpush.msra.mxu0 0.0
        %2031 = vmatpush.msra.mxu0 0.0
        %2032 = vmatpush.msra.mxu0 0.0
        %2033 = vmatpush.msra.mxu0 0.0
        %2034 = vmatpush.msra.mxu0 0.0
        %2035 = vmatpush.msra.mxu0 0.0
        %2036 = vmatpush.msra.mxu0 0.0
        %2037 = vmatpush.msra.mxu0 0.0
        %2038 = vmatpush.msra.mxu0 %v1994
        %2039 = vmatmul.f32.gmra.mxu0 %v2021
        %v2040 = vpop.f32.mrf.mxu0
        %v2041 = vadd.f32 0.0, %v2040
        %2042 = vdwg.mxu0
        %v2044 = vsel %vm885, %v1967, 0
        %2046 = vmatpush.msra.mxu0 0.0
        %2047 = vmatpush.msra.mxu0 0.0
        %2048 = vmatpush.msra.mxu0 0.0
        %2049 = vmatpush.msra.mxu0 0.0
        %2050 = vmatpush.msra.mxu0 0.0
        %2051 = vmatpush.msra.mxu0 0.0
        %2052 = vmatpush.msra.mxu0 0.0
        %2053 = vmatpush.msra.mxu0 0.0
        %2054 = vmatpush.msra.mxu0 0.0
        %2055 = vmatpush.msra.mxu0 0.0
        %2056 = vmatpush.msra.mxu0 0.0
        %2057 = vmatpush.msra.mxu0 0.0
        %2058 = vmatpush.msra.mxu0 0.0
        %2059 = vmatpush.msra.mxu0 0.0
        %2060 = vmatpush.msra.mxu0 0.0
        %2061 = vmatpush.msra.mxu0 %v1995
        %2062 = vmatmul.f32.gmra.mxu0 %v2044
        %v2063 = vpop.f32.mrf.mxu0
        %v2064 = vadd.f32 0.0, %v2063
        %2065 = vdwg.mxu0
        %v2067 = vsel %vm885, %v1990, 0
        %2069 = vmatpush.msra.mxu0 0.0
        %2070 = vmatpush.msra.mxu0 0.0
        %2071 = vmatpush.msra.mxu0 0.0
        %2072 = vmatpush.msra.mxu0 0.0
        %2073 = vmatpush.msra.mxu0 0.0
        %2074 = vmatpush.msra.mxu0 0.0
        %2075 = vmatpush.msra.mxu0 0.0
        %2076 = vmatpush.msra.mxu0 0.0
        %2077 = vmatpush.msra.mxu0 0.0
        %2078 = vmatpush.msra.mxu0 0.0
        %2079 = vmatpush.msra.mxu0 0.0
        %2080 = vmatpush.msra.mxu0 0.0
        %2081 = vmatpush.msra.mxu0 0.0
        %2082 = vmatpush.msra.mxu0 0.0
        %2083 = vmatpush.msra.mxu0 0.0
        %2084 = vmatpush.msra.mxu0 %v1996
        %2085 = vmatmul.f32.gmra.mxu0 %v2067
        %v2086 = vpop.f32.mrf.mxu0
        %v2087 = vadd.f32 0.0, %v2086
        %2088 = vdwg.mxu0
        %v2089 = vsel %vm577, %v2018, 0.0
        %v2090 = vsel %vm577, %v2041, 0.0
        %v2091 = vadd.f32 %v2089, %v2090
        %v2092 = vsel %vm577, %v2064, 0.0
        %v2093 = vadd.f32 %v2091, %v2092
        %v2094 = vsel %vm577, %v2087, 0.0
        %v2095 = vadd.f32 %v2093, %v2094
        %s2096 = scalar_lea.vmem %s8, 1
        %v2097 = vld [vmem:[%s2096] sm:$0x1]
        %v2099 = vperm.slane %v2097, 0
        %v2101 = vadd.f32 %v2095, %v2099
        %v2102 = vadd.f32 %v1390, %v2101
        %s2103 = scalar_lea.vmem %s9, 1
        %v2104 = vld [vmem:[%s2103] sm:$0x1]
        %s2105 = scalar_lea.vmem %s10, 1
        %v2106 = vld [vmem:[%s2105] sm:$0x1]
        %v2107 = vsel %vm577, %v2102, 0.0
        %2108 = vadd.xlane.f32.xlu0 %v2107
        %v2109 = vpop.xlane.xlu0 %2108
        %v2110 = vmul.f32 %v2109, %v1262
        %v2111 = vsub.f32 %v2102, %v2110
        %v2112 = vmul.f32 %v2111, %v2111
        %v2113 = vsel %vm577, %v2112, 0.0
        %2114 = vadd.xlane.f32.xlu0 %v2113
        %v2115 = vpop.xlane.xlu0 %2114
        %v2116 = vmul.f32 %v2115, %v1262
        %v2117 = vadd.f32 %v2116, 1e-05
        %v2118 = vrsqrt.pop %v2117
        %v2119 = vmul.f32 %v2118, %v2117
        %v2120 = vmul.f32 %v2119, %v2118
        %v2121 = vmul.f32 0.5, %v2120
        %v2122 = vsub.f32 1.5, %v2121
        %v2123 = vmul.f32 %v2118, %v2122
        %vm2124 = vweird.f32 %v2117
        %vm2125 = vweird.f32 %v2118
        %vm2126 = vmor %vm2124, %vm2125
        %v2127 = vsel %vm2126, %v2118, %v2123
        %v2128 = vmul.f32 %v2111, %v2127
        %v2130 = vperm.slane %v2104, 0
        %v2132 = vmul.f32 %v2128, %v2130
        %v2134 = vperm.slane %v2106, 0
        %v2136 = vadd.f32 %v2132, %v2134
        %s2137 = scalar_lea.vmem %s11, 32
        %v2138 = vld [vmem:[%s2137] sm:$0xff]
        %v2139 = vld [vmem:[%s2137 + $0x8] sm:$0xff]
        %v2140 = vld [vmem:[%s2137 + $0x10] sm:$0xff]
        %v2141 = vld [vmem:[%s2137 + $0x18] sm:$0xff]
        %s2142 = scalar_lea.vmem %s12, 1
        %v2143 = vld [vmem:[%s2142] sm:$0x1]
        %v2145 = vperm.slane %v2143, 0
        %v2148 = vsel %vm577, %v2136, 0
        %2150 = vmatpush.msra.mxu0 0.0
        %2151 = vmatpush.msra.mxu0 0.0
        %2152 = vmatpush.msra.mxu0 0.0
        %2153 = vmatpush.msra.mxu0 0.0
        %2154 = vmatpush.msra.mxu0 0.0
        %2155 = vmatpush.msra.mxu0 0.0
        %2156 = vmatpush.msra.mxu0 0.0
        %2157 = vmatpush.msra.mxu0 0.0
        %2158 = vmatpush.msra.mxu0 0.0
        %2159 = vmatpush.msra.mxu0 0.0
        %2160 = vmatpush.msra.mxu0 0.0
        %2161 = vmatpush.msra.mxu0 0.0
        %2162 = vmatpush.msra.mxu0 %v2141
        %2163 = vmatpush.msra.mxu0 %v2140
        %2164 = vmatpush.msra.mxu0 %v2139
        %2165 = vmatpush.msra.mxu0 %v2138
        %2166 = vmatmul.f32.gmra.mxu0 %v2148
        %v2167 = vpop.f32.mrf.mxu0
        %v2168 = vadd.f32 %v2145, %v2167
        %2169 = vdwg.mxu0
        %v2170 = vmax.f32 %v2168, 0.0
        %s2171 = scalar_lea.vmem %s13, 64
        %v2172 = vld [vmem:[%s2171] sm:$0xff]
        %v2173 = vld [vmem:[%s2171 + $0x8] sm:$0xff]
        %v2174 = vld [vmem:[%s2171 + $0x10] sm:$0xff]
        %v2175 = vld [vmem:[%s2171 + $0x18] sm:$0xff]
        %v2176 = vld [vmem:[%s2171 + $0x20] sm:$0xff]
        %v2177 = vld [vmem:[%s2171 + $0x28] sm:$0xff]
        %v2178 = vld [vmem:[%s2171 + $0x30] sm:$0xff]
        %v2179 = vld [vmem:[%s2171 + $0x38] sm:$0xff]
        %s2180 = scalar_lea.vmem %s14, 1
        %v2181 = vld [vmem:[%s2180] sm:$0x1]
        %v2183 = vperm.slane %v2181, 0
        %v2186 = vsel %vm1334, %v2170, 0
        %2188 = vmatpush.msra.mxu0 0.0
        %2189 = vmatpush.msra.mxu0 0.0
        %2190 = vmatpush.msra.mxu0 0.0
        %2191 = vmatpush.msra.mxu0 0.0
        %2192 = vmatpush.msra.mxu0 0.0
        %2193 = vmatpush.msra.mxu0 0.0
        %2194 = vmatpush.msra.mxu0 0.0
        %2195 = vmatpush.msra.mxu0 0.0
        %2196 = vmatpush.msra.mxu0 %v2179
        %2197 = vmatpush.msra.mxu0 %v2178
        %2198 = vmatpush.msra.mxu0 %v2177
        %2199 = vmatpush.msra.mxu0 %v2176
        %2200 = vmatpush.msra.mxu0 %v2175
        %2201 = vmatpush.msra.mxu0 %v2174
        %2202 = vmatpush.msra.mxu0 %v2173
        %2203 = vmatpush.msra.mxu0 %v2172
        %2204 = vmatmul.f32.gmra.mxu0 %v2186
        %v2205 = vpop.f32.mrf.mxu0
        %v2206 = vadd.f32 %v2183, %v2205
        %2207 = vdwg.mxu0
        %v2208 = vadd.f32 %v2136, %v2206
        %s2209 = scalar_lea.vmem %s15, 1
        %v2210 = vld [vmem:[%s2209] sm:$0x1]
        %s2211 = scalar_lea.vmem %s16, 1
        %v2212 = vld [vmem:[%s2211] sm:$0x1]
        %v2213 = vsel %vm577, %v2208, 0.0
        %2214 = vadd.xlane.f32.xlu0 %v2213
        %v2215 = vpop.xlane.xlu0 %2214
        %v2216 = vmul.f32 %v2215, %v1262
        %v2217 = vsub.f32 %v2208, %v2216
        %v2218 = vmul.f32 %v2217, %v2217
        %v2219 = vsel %vm577, %v2218, 0.0
        %2220 = vadd.xlane.f32.xlu0 %v2219
        %v2221 = vpop.xlane.xlu0 %2220
        %v2222 = vmul.f32 %v2221, %v1262
        %v2223 = vadd.f32 %v2222, 1e-05
        %v2224 = vrsqrt.pop %v2223
        %v2225 = vmul.f32 %v2224, %v2223
        %v2226 = vmul.f32 %v2225, %v2224
        %v2227 = vmul.f32 0.5, %v2226
        %v2228 = vsub.f32 1.5, %v2227
        %v2229 = vmul.f32 %v2224, %v2228
        %vm2230 = vweird.f32 %v2223
        %vm2231 = vweird.f32 %v2224
        %vm2232 = vmor %vm2230, %vm2231
        %v2233 = vsel %vm2232, %v2224, %v2229
        %v2234 = vmul.f32 %v2217, %v2233
        %v2236 = vperm.slane %v2210, 0
        %v2238 = vmul.f32 %v2234, %v2236
        %v2240 = vperm.slane %v2212, 0
        %v2242 = vadd.f32 %v2238, %v2240
        %2243 = vst.msk [vmem:[%s539] sm:$0xff] %vm577, %v2242
        %s2244 = sand.u32 %s401, 1
        %s2245 = scalar_lea.sflag [#allocation3], %s2244
        %s2246 = sand.u32 %s401, 1
        %s2247 = smul.addr %s2246, 8
        %s2248 = scalar_lea.vmem [#allocation2], %s2247
        // Predicated region
        $region89: #{tpu_custom_call.1} parent=87 // pred_check
          %p2249 = pneg %p411
        $region90: #{tpu_custom_call.1} parent=87 // pred_check_branch
          %2251 = sbr.rel (%p2249) target = $region92
        $region91: #{tpu_custom_call.1} parent=87 // pred_region
          %2253 = vsyncadd %s2245, 0
          %s2254 = smul.addr %s31, 8
          %s2255 = scalar_lea.hbm %s17, %s2254
          %s2257 = sshll.u32 %s2248, 4
          %s2258 = int_to_ptr.vmem [resolvable:$true] %s2257
          %s2259 = sshll.u32 %s2255, 4
          %s2260 = int_to_ptr.hbm [resolvable:$true] %s2259
          %2262 = dma.vmem_to_hbm [thread:$0]  %s2258, 128, %s2260, %s2245
        $region92: #{tpu_custom_call.1} parent=87 // pred_fallthru
          _
      $region88: #{tpu_custom_call.1} parent=5 // pred_fallthru
        _
      %p2263 = scmp.le.s32.totalorder 2, %s26
      // Predicated region
      $region93: #{tpu_custom_call.1} parent=5 // pred_check
        %p2264 = pneg %p2263
      $region94: #{tpu_custom_call.1} parent=5 // pred_check_branch
        %2266 = sbr.rel (%p2264) target = $region96
      $region95: #{tpu_custom_call.1} parent=5 // pred_region
        %s2267 = ssub.s32 %s26, 2
        // Predicated region
        $region97: #{tpu_custom_call.1} parent=95 // pred_check
          %p2268 = pneg %p417
        $region98: #{tpu_custom_call.1} parent=95 // pred_check_branch
          %2270 = sbr.rel (%p2268) target = $region100
        $region99: #{tpu_custom_call.1} parent=95 // pred_region
          %s2271 = sand.u32 %s402, 1
          %s2272 = scalar_lea.sflag [#allocation3], %s2271
          %s2273 = sand.u32 %s402, 1
          %s2274 = smul.addr %s2273, 8
          %s2275 = scalar_lea.vmem [#allocation2], %s2274
          %2277 = dma.done %s2272, 128
        $region100: #{tpu_custom_call.1} parent=95 // pred_fallthru
          _
      $region96: #{tpu_custom_call.1} parent=5 // pred_fallthru
        _
    $region6: #{tpu_custom_call.1} parent=1 // loop_footer
      %s30 = sadd.s32 1, %s26
    $region7: #{tpu_custom_call.1} parent=1 // loop_footer_branch
      %25 = sbr.rel target = $region3
    $region8: #{tpu_custom_call.1} parent=1 // loop_exit
      _
    %2278 = vsyncpa [#allocation3], 1
    %s2279 = scalar_lea.sflag [#allocation3], 1
    %2280 = vsyncpa %s2279, 1

</llo_original>
